<compile_context>
chip_gen: v6e
topology: v6e:2x2x1
jax: 0.10.0
libtpu: 0.0.40
codegen_flags: <defaults>
</compile_context>

<pallas_src>
import functools

import jax
import jax.numpy as jnp
from jax.experimental import pallas as pl
from jax.experimental.pallas import tpu as pltpu


def _round_up(x, m):
    return ((x + m - 1) // m) * m


def _mlp_kernel(x_ref, w1_ref, b1_ref, w2_ref, b2_ref, w3_ref, b3_ref, o_ref):
    # In-kernel cast of the activation tile to the MXU dtype (bf16); hides under MXU/DMA.
    x = x_ref[...].astype(w1_ref.dtype)

    # Layer 1: MXU matmul (bf16 operands, f32 accumulation); bias + ReLU in f32 on the VPU.
    h1 = jnp.dot(x, w1_ref[...], preferred_element_type=jnp.float32)
    h1 = jnp.maximum(h1 + b1_ref[...], 0.0)

    # Layer 2.
    h2 = jnp.dot(h1.astype(w2_ref.dtype), w2_ref[...], preferred_element_type=jnp.float32)
    h2 = jnp.maximum(h2 + b2_ref[...], 0.0)

    # Regression head, lane-padded to 128 output columns (cols 1..127 are zero weights/bias):
    # same MXU + f32-accumulate path as the other layers, and a lane-dense unmasked store.
    out = jnp.dot(h2.astype(w3_ref.dtype), w3_ref[...], preferred_element_type=jnp.float32)
    o_ref[...] = (out + b3_ref[...]).astype(o_ref.dtype)


def _tensorcores_per_chip():
    # Dual-TC detection (v7x). Defensive: default to single-TC behaviour.
    try:
        kind = jax.devices()[0].device_kind.lower()
    except Exception:
        return 1
    return 2 if "v7" in kind else 1


def _pick_block_b(B, max_block_b=1024):
    if _tensorcores_per_chip() >= 2 and B > 128:
        blk = _round_up(pl.cdiv(B, 2), 128)   # even 2-way split across the dual TCs
    else:
        blk = _round_up(B, 128)               # whole batch in one grid step on single-TC
    return max(128, min(blk, max_block_b))


@functools.partial(jax.jit, static_argnames=("block_b", "out_dim"))
def _forward(x, kparams, block_b, out_dim):
    w1, b1 = kparams["w1"], kparams["b1"]
    w2, b2 = kparams["w2"], kparams["b2"]
    w3, b3 = kparams["w3"], kparams["b3"]

    B, D = x.shape
    Dp, H1 = w1.shape
    H2, OP = w3.shape          # OP = lane-padded head width (128)

    if D != Dp:                # zero-pad layer-1 contraction dim (no-op when D % 128 == 0)
        x = jnp.pad(x, ((0, 0), (0, Dp - D)))

    grid = (pl.cdiv(B, block_b),)

    out = pl.pallas_call(
        _mlp_kernel,
        out_shape=jax.ShapeDtypeStruct((B, OP), jnp.float32),
        grid_spec=pltpu.PrefetchScalarGridSpec(
            num_scalar_prefetch=0,
            grid=grid,
            in_specs=[
                pl.BlockSpec((block_b, Dp), lambda i: (i, 0)),   # x tile over batch
                pl.BlockSpec((Dp, H1), lambda i: (0, 0)),        # weights resident in VMEM
                pl.BlockSpec((1, H1), lambda i: (0, 0)),
                pl.BlockSpec((H1, H2), lambda i: (0, 0)),
                pl.BlockSpec((1, H2), lambda i: (0, 0)),
                pl.BlockSpec((H2, OP), lambda i: (0, 0)),        # lane-padded head weight
                pl.BlockSpec((1, OP), lambda i: (0, 0)),         # lane-padded head bias
            ],
            out_specs=pl.BlockSpec((block_b, OP), lambda i: (i, 0)),
        ),
        compiler_params=pltpu.CompilerParams(
            dimension_semantics=("parallel",),
        ),
    )(x, w1, b1, w2, b2, w3, b3)

    # Slice the real head column(s) out of the lane-dense slab (fused inside the jit).
    return out[:, :out_dim]


def aesthetic_predictor_forward(x, kparams, output_dim=1, max_block_b=1024):
    """Fused forward pass of AestheticPredictor. x: (B, D) f32; kparams from prepare_params()."""
    block_b = _pick_block_b(x.shape[0], max_block_b)
    return _forward(x, kparams, block_b=block_b, out_dim=output_dim)


def init_params(key, input_dim, hidden_dims=(512, 256), output_dim=1):
    """f32 params with weights stored transposed relative to nn.Linear: (in, out)."""
    dims = [input_dim] + list(hidden_dims) + [output_dim]
    names = ["1", "2", "3"]
    params = {}
    for i, (din, dout) in enumerate(zip(dims[:-1], dims[1:])):
        key, kw, kb = jax.random.split(key, 3)
        scale = 1.0 / jnp.sqrt(jnp.float32(din))
        params[f"w{names[i]}"] = jax.random.uniform(
            kw, (din, dout), jnp.float32, -scale, scale)
        params[f"b{names[i]}"] = jax.random.uniform(
            kb, (1, dout), jnp.float32, -scale, scale)
    return params


def prepare_params(params, lane=128):
    """One-time conversion of f32 (in, out)-layout params into kernel-ready tensors:
    bf16 matmul weights, zero-padded layer-1 contraction dim, lane-padded (width-128)
    regression-head weight/bias; biases stay f32."""
    w1, b1 = params["w1"], params["b1"]
    w2, b2 = params["w2"], params["b2"]
    w3, b3 = params["w3"], params["b3"]
    D = w1.shape[0]
    O = w3.shape[1]
    Dp = _round_up(D, lane)
    OP = _round_up(O, lane)
    return {
        "w1": jnp.pad(w1, ((0, Dp - D), (0, 0))).astype(jnp.bfloat16),
        "b1": b1.astype(jnp.float32),
        "w2": w2.astype(jnp.bfloat16),
        "b2": b2.astype(jnp.float32),
        "w3": jnp.pad(w3, ((0, 0), (0, OP - O))).astype(jnp.bfloat16),
        "b3": jnp.pad(b3, ((0, 0), (0, OP - O))).astype(jnp.float32),
    }


def reference_forward(x, params):
    h1 = jnp.maximum(x @ params["w1"] + params["b1"], 0.0)
    h2 = jnp.maximum(h1 @ params["w2"] + params["b2"], 0.0)
    return h2 @ params["w3"] + params["b3"]


if __name__ == "__main__":
    key = jax.random.PRNGKey(0)
    key, kx = jax.random.split(key)

    batch = 256               # small, lane/sublane friendly
    input_dim = 128           # small synthetic feature dim (CLIP-like embedding, shrunk)
    hidden_dims = (512, 256)  # module defaults
    output_dim = 1

    x = jax.random.normal(kx, (batch, input_dim), jnp.float32)
    params = init_params(key, input_dim, hidden_dims, output_dim)
    kparams = prepare_params(params)   # one-time bf16 cast / padding (not per call)

    out = aesthetic_predictor_forward(x, kparams, output_dim=output_dim)
    out = jax.block_until_ready(out)

    ref = reference_forward(x, params)
    assert out.shape == (batch, output_dim), out.shape
    # bf16 MXU operands with f32 accumulation -> loosen tolerance vs the f32 reference.
    max_err = jnp.max(jnp.abs(out - ref))
    assert jnp.allclose(out, ref, atol=5e-2, rtol=5e-2), f"mismatch: max err {max_err}"

    print("KERNEL_OK")
</pallas_src>

<mosaic_0001>
module attributes {stable_mosaic.version = 11 : i64} {
  func.func @_mlp_kernel(%arg0: i32, %arg1: memref<256x128xf32, #tpu.memory_space<vmem>>, %arg2: memref<128x512xbf16, #tpu.memory_space<vmem>>, %arg3: memref<1x512xf32, #tpu.memory_space<vmem>>, %arg4: memref<512x256xbf16, #tpu.memory_space<vmem>>, %arg5: memref<1x256xf32, #tpu.memory_space<vmem>>, %arg6: memref<256x128xbf16, #tpu.memory_space<vmem>>, %arg7: memref<1x128xf32, #tpu.memory_space<vmem>>, %arg8: memref<256x128xf32, #tpu.memory_space<vmem>>) attributes {dimension_semantics = [#tpu.dimension_semantics<parallel>], iteration_bounds = array<i64: 1>, scalar_prefetch = 0 : i64, scratch_operands = 0 : i64, tpu.core_type = #tpu.core_type<tc>, window_params = [{transform_indices = @transform_0, window_bounds = array<i64: 256, 128>}, {pipeline_mode = #tpu.pipeline_mode<synchronous>, transform_indices = @transform_1, window_bounds = array<i64: 128, 512>}, {pipeline_mode = #tpu.pipeline_mode<synchronous>, transform_indices = @transform_2, window_bounds = array<i64: 1, 512>}, {pipeline_mode = #tpu.pipeline_mode<synchronous>, transform_indices = @transform_3, window_bounds = array<i64: 512, 256>}, {pipeline_mode = #tpu.pipeline_mode<synchronous>, transform_indices = @transform_4, window_bounds = array<i64: 1, 256>}, {pipeline_mode = #tpu.pipeline_mode<synchronous>, transform_indices = @transform_5, window_bounds = array<i64: 256, 128>}, {pipeline_mode = #tpu.pipeline_mode<synchronous>, transform_indices = @transform_6, window_bounds = array<i64: 1, 128>}, {transform_indices = @transform_7, window_bounds = array<i64: 256, 128>}]} {
    %c0 = arith.constant 0 : index
    %c0_0 = arith.constant 0 : index
    %0 = vector.load %arg1[%c0, %c0_0] : memref<256x128xf32, #tpu.memory_space<vmem>>, vector<256x128xf32>
    %1 = arith.truncf %0 : vector<256x128xf32> to vector<256x128xbf16>
    %c0_1 = arith.constant 0 : index
    %c0_2 = arith.constant 0 : index
    %2 = vector.load %arg2[%c0_1, %c0_2] : memref<128x512xbf16, #tpu.memory_space<vmem>>, vector<128x512xbf16>
    %cst = arith.constant dense<0.000000e+00> : vector<256x512xf32>
    %3 = tpu.matmul %1, %2, %cst {dimension_numbers = #tpu.dot_dimension_numbers<[1], [0], [0], [1], [0, 0, 1, 1], [], []>} : vector<256x128xbf16>, vector<128x512xbf16>, vector<256x512xf32> -> vector<256x512xf32>
    %c0_3 = arith.constant 0 : index
    %c0_4 = arith.constant 0 : index
    %4 = vector.load %arg3[%c0_3, %c0_4] : memref<1x512xf32, #tpu.memory_space<vmem>>, vector<1x512xf32>
    %5 = vector.broadcast %4 : vector<1x512xf32> to vector<256x512xf32>
    %6 = arith.addf %3, %5 : vector<256x512xf32>
    %cst_5 = arith.constant 0.000000e+00 : f32
    %7 = vector.broadcast %cst_5 : f32 to vector<256x512xf32>
    %8 = arith.maximumf %6, %7 : vector<256x512xf32>
    %9 = arith.truncf %8 : vector<256x512xf32> to vector<256x512xbf16>
    %c0_6 = arith.constant 0 : index
    %c0_7 = arith.constant 0 : index
    %10 = vector.load %arg4[%c0_6, %c0_7] : memref<512x256xbf16, #tpu.memory_space<vmem>>, vector<512x256xbf16>
    %cst_8 = arith.constant dense<0.000000e+00> : vector<256x256xf32>
    %11 = tpu.matmul %9, %10, %cst_8 {dimension_numbers = #tpu.dot_dimension_numbers<[1], [0], [0], [1], [0, 0, 1, 1], [], []>} : vector<256x512xbf16>, vector<512x256xbf16>, vector<256x256xf32> -> vector<256x256xf32>
    %c0_9 = arith.constant 0 : index
    %c0_10 = arith.constant 0 : index
    %12 = vector.load %arg5[%c0_9, %c0_10] : memref<1x256xf32, #tpu.memory_space<vmem>>, vector<1x256xf32>
    %13 = vector.broadcast %12 : vector<1x256xf32> to vector<256x256xf32>
    %14 = arith.addf %11, %13 : vector<256x256xf32>
    %cst_11 = arith.constant 0.000000e+00 : f32
    %15 = vector.broadcast %cst_11 : f32 to vector<256x256xf32>
    %16 = arith.maximumf %14, %15 : vector<256x256xf32>
    %17 = arith.truncf %16 : vector<256x256xf32> to vector<256x256xbf16>
    %c0_12 = arith.constant 0 : index
    %c0_13 = arith.constant 0 : index
    %18 = vector.load %arg6[%c0_12, %c0_13] : memref<256x128xbf16, #tpu.memory_space<vmem>>, vector<256x128xbf16>
    %cst_14 = arith.constant dense<0.000000e+00> : vector<256x128xf32>
    %19 = tpu.matmul %17, %18, %cst_14 {dimension_numbers = #tpu.dot_dimension_numbers<[1], [0], [0], [1], [0, 0, 1, 1], [], []>} : vector<256x256xbf16>, vector<256x128xbf16>, vector<256x128xf32> -> vector<256x128xf32>
    %c0_15 = arith.constant 0 : index
    %c0_16 = arith.constant 0 : index
    %20 = vector.load %arg7[%c0_15, %c0_16] : memref<1x128xf32, #tpu.memory_space<vmem>>, vector<1x128xf32>
    %21 = vector.broadcast %20 : vector<1x128xf32> to vector<256x128xf32>
    %22 = arith.addf %19, %21 : vector<256x128xf32>
    %c0_17 = arith.constant 0 : index
    %c0_18 = arith.constant 0 : index
    %23 = vector.load %arg8[%c0_17, %c0_18] : memref<256x128xf32, #tpu.memory_space<vmem>>, vector<256x128xf32>
    tpu.vector_store %arg8[%c0_17, %c0_18], %22 {strides = array<i32>} : memref<256x128xf32, #tpu.memory_space<vmem>>, vector<256x128xf32>,
    return
  }
  func.func @transform_0(%arg0: i32) -> (i32, i32) {
    %c0_i32 = arith.constant 0 : i32
    %c0_i32_0 = arith.constant 0 : i32
    return %arg0, %c0_i32 : i32, i32
  }
  func.func @transform_1(%arg0: i32) -> (i32, i32) {
    %c0_i32 = arith.constant 0 : i32
    %c0_i32_0 = arith.constant 0 : i32
    %c0_i32_1 = arith.constant 0 : i32
    return %c0_i32, %c0_i32_0 : i32, i32
  }
  func.func @transform_2(%arg0: i32) -> (i32, i32) {
    %c0_i32 = arith.constant 0 : i32
    %c0_i32_0 = arith.constant 0 : i32
    %c0_i32_1 = arith.constant 0 : i32
    return %c0_i32, %c0_i32_0 : i32, i32
  }
  func.func @transform_3(%arg0: i32) -> (i32, i32) {
    %c0_i32 = arith.constant 0 : i32
    %c0_i32_0 = arith.constant 0 : i32
    %c0_i32_1 = arith.constant 0 : i32
    return %c0_i32, %c0_i32_0 : i32, i32
  }
  func.func @transform_4(%arg0: i32) -> (i32, i32) {
    %c0_i32 = arith.constant 0 : i32
    %c0_i32_0 = arith.constant 0 : i32
    %c0_i32_1 = arith.constant 0 : i32
    return %c0_i32, %c0_i32_0 : i32, i32
  }
  func.func @transform_5(%arg0: i32) -> (i32, i32) {
    %c0_i32 = arith.constant 0 : i32
    %c0_i32_0 = arith.constant 0 : i32
    %c0_i32_1 = arith.constant 0 : i32
    return %c0_i32, %c0_i32_0 : i32, i32
  }
  func.func @transform_6(%arg0: i32) -> (i32, i32) {
    %c0_i32 = arith.constant 0 : i32
    %c0_i32_0 = arith.constant 0 : i32
    %c0_i32_1 = arith.constant 0 : i32
    return %c0_i32, %c0_i32_0 : i32, i32
  }
  func.func @transform_7(%arg0: i32) -> (i32, i32) {
    %c0_i32 = arith.constant 0 : i32
    %c0_i32_0 = arith.constant 0 : i32
    return %arg0, %c0_i32 : i32, i32
  }
}

</mosaic_0001>

<llo_original>
// kernel: _forward.1
$region0: #{_forward.1}
  #allocation0 [shape = 'u32[]', space=smem, size = 0x4, offset = 0x4, fixed_abs, tag = 'smem constant byte address 0x4 - core index']
  #allocation1 [shape = 'u32[144,128]{1,0:T(1,128)}', space=vmem, size = 0x12000, scoped, tag = 'internal scratch']
  %s0 = inlined_call_operand.hbm [shape: f32[256,128], index: 0, kind: input, shape index: {}]
  %s1 = inlined_call_operand.hbm [shape: bf16[128,512], index: 1, kind: input, shape index: {}]
  %s2 = inlined_call_operand.hbm [shape: f32[1,512], index: 2, kind: input, shape index: {}]
  %s3 = inlined_call_operand.hbm [shape: bf16[512,256], index: 3, kind: input, shape index: {}]
  %s4 = inlined_call_operand.vmem [shape: f32[1,256], index: 4, kind: input, shape index: {}]
  %s5 = inlined_call_operand.hbm [shape: bf16[256,128], index: 5, kind: input, shape index: {}]
  %s6 = inlined_call_operand.vmem [shape: f32[1,128], index: 6, kind: input, shape index: {}]
  %s7 = inlined_call_operand.vmem [shape: f32[256,128], index: 7, kind: output, shape index: {}]
  %s8 = sld [smem:[#allocation0]]
  $region58: #{_forward.1} parent=0
    _
  %s10 = ssub.s32 1, %s8
  %s11 = scalar_select 0, %s10, %s8
  $region1: #{_forward.1} parent=0
    #allocation2 [shape = 'u8[131072]{0}', space=vmem, size = 0x20000, scoped, tag = 'input window, operand 0, single buffered']
    #allocation3 [shape = 's32[1]{0}', space=sflag, size = 0x4, scoped, tag = 'scoped memory for _forward.1']
    #allocation4 [shape = 'u8[131072]{0}', space=vmem, size = 0x20000, scoped, tag = 'input window, operand 1, single buffered']
    #allocation5 [shape = 's32[1]{0}', space=sflag, size = 0x4, scoped, tag = 'scoped memory for _forward.1']
    #allocation6 [shape = 'u8[2048]{0}', space=vmem, size = 0x800, scoped, tag = 'input window, operand 2, single buffered']
    #allocation7 [shape = 'u8[262144]{0}', space=vmem, size = 0x40000, scoped, tag = 'input window, operand 3, single buffered']
    #allocation8 [shape = 's32[1]{0}', space=sflag, size = 0x4, scoped, tag = 'scoped memory for _forward.1']
    #allocation9 [shape = 'u8[65536]{0}', space=vmem, size = 0x10000, scoped, tag = 'input window, operand 5, single buffered']
    %12 = vsyncpa [#allocation3], 0
    %13 = vsyncpa [#allocation5], 0
    %14 = vsyncpa [#allocation8], 0
    // Predicated region
    $region2: #{_forward.1} parent=1 // pred_check
      _
    $region3: #{_forward.1} parent=1 // pred_check_branch
      %16 = sbr.rel (0) target = $region5
    $region4: #{_forward.1} parent=1 // pred_region
      %s18 = ssub.s32 4096, 4096
      %19 = vsyncadd [#allocation3], %s18
      %s20 = sshll.u32 [#allocation2], 4
      %s21 = int_to_ptr.vmem [resolvable:$true] %s20
      %26 = dma.hbm_to_vmem [thread:$0]  %s0, 4096, %s21, [#allocation3], 128, 128, 8
    $region5: #{_forward.1} parent=1 // pred_fallthru
      _
    // Predicated region
    $region6: #{_forward.1} parent=1 // pred_check
      _
    $region7: #{_forward.1} parent=1 // pred_check_branch
      %28 = sbr.rel (0) target = $region9
    $region8: #{_forward.1} parent=1 // pred_region
      %s30 = ssub.s32 4096, 4096
      %31 = vsyncadd [#allocation5], %s30
      %s32 = sshll.u32 [#allocation4], 4
      %s33 = int_to_ptr.vmem [resolvable:$true] %s32
      %38 = dma.hbm_to_vmem [thread:$0]  %s1, 4096, %s33, [#allocation5], 256, 256, 16
    $region9: #{_forward.1} parent=1 // pred_fallthru
      _
    // Predicated region
    $region10: #{_forward.1} parent=1 // pred_check
      _
    $region11: #{_forward.1} parent=1 // pred_check_branch
      %40 = sbr.rel (0) target = $region13
    $region12: #{_forward.1} parent=1 // pred_region
      %s42 = ssub.s32 64, 64
      %43 = vsyncadd [#allocation5], %s42
      %s45 = sshll.u32 [#allocation6], 4
      %s46 = int_to_ptr.vmem [resolvable:$true] %s45
      %48 = dma.hbm_to_vmem [thread:$0]  %s2, 64, %s46, [#allocation5]
    $region13: #{_forward.1} parent=1 // pred_fallthru
      _
    // Predicated region
    $region14: #{_forward.1} parent=1 // pred_check
      _
    $region15: #{_forward.1} parent=1 // pred_check_branch
      %50 = sbr.rel (0) target = $region17
    $region16: #{_forward.1} parent=1 // pred_region
      %s52 = ssub.s32 8192, 8192
      %53 = vsyncadd [#allocation8], %s52
      %s54 = sshll.u32 [#allocation7], 4
      %s55 = int_to_ptr.vmem [resolvable:$true] %s54
      %60 = dma.hbm_to_vmem [thread:$0]  %s3, 8192, %s55, [#allocation8], 128, 128, 8
    $region17: #{_forward.1} parent=1 // pred_fallthru
      _
    // Predicated region
    $region18: #{_forward.1} parent=1 // pred_check
      _
    $region19: #{_forward.1} parent=1 // pred_check_branch
      %62 = sbr.rel (0) target = $region21
    $region20: #{_forward.1} parent=1 // pred_region
      _
    $region21: #{_forward.1} parent=1 // pred_fallthru
      _
    // Predicated region
    $region22: #{_forward.1} parent=1 // pred_check
      _
    $region23: #{_forward.1} parent=1 // pred_check_branch
      %64 = sbr.rel (0) target = $region25
    $region24: #{_forward.1} parent=1 // pred_region
      %s66 = ssub.s32 2048, 2048
      %67 = vsyncadd [#allocation8], %s66
      %s68 = sshll.u32 [#allocation9], 4
      %s69 = int_to_ptr.vmem [resolvable:$true] %s68
      %74 = dma.hbm_to_vmem [thread:$0]  %s5, 2048, %s69, [#allocation8], 64, 64, 4
    $region25: #{_forward.1} parent=1 // pred_fallthru
      _
    // Predicated region
    $region26: #{_forward.1} parent=1 // pred_check
      _
    $region27: #{_forward.1} parent=1 // pred_check_branch
      %76 = sbr.rel (0) target = $region29
    $region28: #{_forward.1} parent=1 // pred_region
      _
    $region29: #{_forward.1} parent=1 // pred_fallthru
      _
    // Predicated region
    $region30: #{_forward.1} parent=1 // pred_check
      _
    $region31: #{_forward.1} parent=1 // pred_check_branch
      %78 = sbr.rel (0) target = $region33
    $region32: #{_forward.1} parent=1 // pred_region
      %79 = dma.done [#allocation3], 4096
    $region33: #{_forward.1} parent=1 // pred_fallthru
      _
    // Predicated region
    $region34: #{_forward.1} parent=1 // pred_check
      _
    $region35: #{_forward.1} parent=1 // pred_check_branch
      %81 = sbr.rel (0) target = $region37
    $region36: #{_forward.1} parent=1 // pred_region
      %82 = dma.done [#allocation5], 4096
    $region37: #{_forward.1} parent=1 // pred_fallthru
      _
    // Predicated region
    $region38: #{_forward.1} parent=1 // pred_check
      _
    $region39: #{_forward.1} parent=1 // pred_check_branch
      %84 = sbr.rel (0) target = $region41
    $region40: #{_forward.1} parent=1 // pred_region
      %85 = dma.done [#allocation5], 64
    $region41: #{_forward.1} parent=1 // pred_fallthru
      _
    // Predicated region
    $region42: #{_forward.1} parent=1 // pred_check
      _
    $region43: #{_forward.1} parent=1 // pred_check_branch
      %87 = sbr.rel (0) target = $region45
    $region44: #{_forward.1} parent=1 // pred_region
      %88 = dma.done [#allocation8], 8192
    $region45: #{_forward.1} parent=1 // pred_fallthru
      _
    // Predicated region
    $region46: #{_forward.1} parent=1 // pred_check
      _
    $region47: #{_forward.1} parent=1 // pred_check_branch
      %90 = sbr.rel (0) target = $region49
    $region48: #{_forward.1} parent=1 // pred_region
      %91 = dma.done [#allocation8], 2048
    $region49: #{_forward.1} parent=1 // pred_fallthru
      _
    %v93 = vld [vmem:[#allocation2] sm:$0xff]
    %v94 = vld [vmem:[#allocation2 + $0x8] sm:$0xff]
    %v95 = vld [vmem:[#allocation2 + $0x10] sm:$0xff]
    %v96 = vld [vmem:[#allocation2 + $0x18] sm:$0xff]
    %v97 = vld [vmem:[#allocation2 + $0x20] sm:$0xff]
    %v98 = vld [vmem:[#allocation2 + $0x28] sm:$0xff]
    %v99 = vld [vmem:[#allocation2 + $0x30] sm:$0xff]
    %v100 = vld [vmem:[#allocation2 + $0x38] sm:$0xff]
    %v101 = vld [vmem:[#allocation2 + $0x40] sm:$0xff]
    %v102 = vld [vmem:[#allocation2 + $0x48] sm:$0xff]
    %v103 = vld [vmem:[#allocation2 + $0x50] sm:$0xff]
    %v104 = vld [vmem:[#allocation2 + $0x58] sm:$0xff]
    %v105 = vld [vmem:[#allocation2 + $0x60] sm:$0xff]
    %v106 = vld [vmem:[#allocation2 + $0x68] sm:$0xff]
    %v107 = vld [vmem:[#allocation2 + $0x70] sm:$0xff]
    %v108 = vld [vmem:[#allocation2 + $0x78] sm:$0xff]
    %v109 = vld [vmem:[#allocation2 + $0x80] sm:$0xff]
    %v110 = vld [vmem:[#allocation2 + $0x88] sm:$0xff]
    %v111 = vld [vmem:[#allocation2 + $0x90] sm:$0xff]
    %v112 = vld [vmem:[#allocation2 + $0x98] sm:$0xff]
    %v113 = vld [vmem:[#allocation2 + $0xa0] sm:$0xff]
    %v114 = vld [vmem:[#allocation2 + $0xa8] sm:$0xff]
    %v115 = vld [vmem:[#allocation2 + $0xb0] sm:$0xff]
    %v116 = vld [vmem:[#allocation2 + $0xb8] sm:$0xff]
    %v117 = vld [vmem:[#allocation2 + $0xc0] sm:$0xff]
    %v118 = vld [vmem:[#allocation2 + $0xc8] sm:$0xff]
    %v119 = vld [vmem:[#allocation2 + $0xd0] sm:$0xff]
    %v120 = vld [vmem:[#allocation2 + $0xd8] sm:$0xff]
    %v121 = vld [vmem:[#allocation2 + $0xe0] sm:$0xff]
    %v122 = vld [vmem:[#allocation2 + $0xe8] sm:$0xff]
    %v123 = vld [vmem:[#allocation2 + $0xf0] sm:$0xff]
    %v124 = vld [vmem:[#allocation2 + $0xf8] sm:$0xff]
    %v125 = vpack.c.bf16 %v94, %v93
    %v126 = vpack.c.bf16 %v96, %v95
    %v127 = vpack.c.bf16 %v98, %v97
    %v128 = vpack.c.bf16 %v100, %v99
    %v129 = vpack.c.bf16 %v102, %v101
    %v130 = vpack.c.bf16 %v104, %v103
    %v131 = vpack.c.bf16 %v106, %v105
    %v132 = vpack.c.bf16 %v108, %v107
    %v133 = vpack.c.bf16 %v110, %v109
    %v134 = vpack.c.bf16 %v112, %v111
    %v135 = vpack.c.bf16 %v114, %v113
    %v136 = vpack.c.bf16 %v116, %v115
    %v137 = vpack.c.bf16 %v118, %v117
    %v138 = vpack.c.bf16 %v120, %v119
    %v139 = vpack.c.bf16 %v122, %v121
    %v140 = vpack.c.bf16 %v124, %v123
    %v141 = vld [vmem:[#allocation4] sm:$0xff]
    %v142 = vld [vmem:[#allocation4 + $0x8] sm:$0xff]
    %v143 = vld [vmem:[#allocation4 + $0x10] sm:$0xff]
    %v144 = vld [vmem:[#allocation4 + $0x18] sm:$0xff]
    %v145 = vld [vmem:[#allocation4 + $0x20] sm:$0xff]
    %v146 = vld [vmem:[#allocation4 + $0x28] sm:$0xff]
    %v147 = vld [vmem:[#allocation4 + $0x30] sm:$0xff]
    %v148 = vld [vmem:[#allocation4 + $0x38] sm:$0xff]
    %v149 = vld [vmem:[#allocation4 + $0x40] sm:$0xff]
    %v150 = vld [vmem:[#allocation4 + $0x48] sm:$0xff]
    %v151 = vld [vmem:[#allocation4 + $0x50] sm:$0xff]
    %v152 = vld [vmem:[#allocation4 + $0x58] sm:$0xff]
    %v153 = vld [vmem:[#allocation4 + $0x60] sm:$0xff]
    %v154 = vld [vmem:[#allocation4 + $0x68] sm:$0xff]
    %v155 = vld [vmem:[#allocation4 + $0x70] sm:$0xff]
    %v156 = vld [vmem:[#allocation4 + $0x78] sm:$0xff]
    %v157 = vld [vmem:[#allocation4 + $0x80] sm:$0xff]
    %v158 = vld [vmem:[#allocation4 + $0x88] sm:$0xff]
    %v159 = vld [vmem:[#allocation4 + $0x90] sm:$0xff]
    %v160 = vld [vmem:[#allocation4 + $0x98] sm:$0xff]
    %v161 = vld [vmem:[#allocation4 + $0xa0] sm:$0xff]
    %v162 = vld [vmem:[#allocation4 + $0xa8] sm:$0xff]
    %v163 = vld [vmem:[#allocation4 + $0xb0] sm:$0xff]
    %v164 = vld [vmem:[#allocation4 + $0xb8] sm:$0xff]
    %v165 = vld [vmem:[#allocation4 + $0xc0] sm:$0xff]
    %v166 = vld [vmem:[#allocation4 + $0xc8] sm:$0xff]
    %v167 = vld [vmem:[#allocation4 + $0xd0] sm:$0xff]
    %v168 = vld [vmem:[#allocation4 + $0xd8] sm:$0xff]
    %v169 = vld [vmem:[#allocation4 + $0xe0] sm:$0xff]
    %v170 = vld [vmem:[#allocation4 + $0xe8] sm:$0xff]
    %v171 = vld [vmem:[#allocation4 + $0xf0] sm:$0xff]
    %v172 = vld [vmem:[#allocation4 + $0xf8] sm:$0xff]
    %v173 = vld [vmem:[#allocation6] sm:$0xf]
    %v175 = vlaneseq
    %v176 = vshrl.u32 %v175, 7
    %v177 = vsub.s32 0, %v176
    %v178 = vrot.slane %v173, %v177
    %v179 = vlaneseq
    %v180 = vshrl.u32 %v179, 7
    %v181 = vsub.s32 1, %v180
    %v182 = vrot.slane %v173, %v181
    %v183 = vlaneseq
    %v184 = vshrl.u32 %v183, 7
    %v185 = vsub.s32 2, %v184
    %v186 = vrot.slane %v173, %v185
    %v187 = vlaneseq
    %v188 = vshrl.u32 %v187, 7
    %v189 = vsub.s32 3, %v188
    %v190 = vrot.slane %v173, %v189
    %v227 = vunpack.c.l.b16 %v141
    %v228 = vunpack.c.h.b16 %v141
    %v229 = vunpack.c.l.b16 %v142
    %v230 = vunpack.c.h.b16 %v142
    %v231 = vunpack.c.l.b16 %v143
    %v232 = vunpack.c.h.b16 %v143
    %v233 = vunpack.c.l.b16 %v144
    %v234 = vunpack.c.h.b16 %v144
    %v235 = vunpack.c.l.b16 %v145
    %v236 = vunpack.c.h.b16 %v145
    %v237 = vunpack.c.l.b16 %v146
    %v238 = vunpack.c.h.b16 %v146
    %v239 = vunpack.c.l.b16 %v147
    %v240 = vunpack.c.h.b16 %v147
    %v241 = vunpack.c.l.b16 %v148
    %v242 = vunpack.c.h.b16 %v148
    %v243 = vunpack.c.l.b16 %v149
    %v244 = vunpack.c.h.b16 %v149
    %v245 = vunpack.c.l.b16 %v150
    %v246 = vunpack.c.h.b16 %v150
    %v247 = vunpack.c.l.b16 %v151
    %v248 = vunpack.c.h.b16 %v151
    %v249 = vunpack.c.l.b16 %v152
    %v250 = vunpack.c.h.b16 %v152
    %v251 = vunpack.c.l.b16 %v153
    %v252 = vunpack.c.h.b16 %v153
    %v253 = vunpack.c.l.b16 %v154
    %v254 = vunpack.c.h.b16 %v154
    %v255 = vunpack.c.l.b16 %v155
    %v256 = vunpack.c.h.b16 %v155
    %v257 = vunpack.c.l.b16 %v156
    %v258 = vunpack.c.h.b16 %v156
    %v259 = vunpack.c.l.b16 %v157
    %v260 = vunpack.c.h.b16 %v157
    %v261 = vunpack.c.l.b16 %v158
    %v262 = vunpack.c.h.b16 %v158
    %v263 = vunpack.c.l.b16 %v159
    %v264 = vunpack.c.h.b16 %v159
    %v265 = vunpack.c.l.b16 %v160
    %v266 = vunpack.c.h.b16 %v160
    %v267 = vunpack.c.l.b16 %v161
    %v268 = vunpack.c.h.b16 %v161
    %v269 = vunpack.c.l.b16 %v162
    %v270 = vunpack.c.h.b16 %v162
    %v271 = vunpack.c.l.b16 %v163
    %v272 = vunpack.c.h.b16 %v163
    %v273 = vunpack.c.l.b16 %v164
    %v274 = vunpack.c.h.b16 %v164
    %v275 = vunpack.c.l.b16 %v165
    %v276 = vunpack.c.h.b16 %v165
    %v277 = vunpack.c.l.b16 %v166
    %v278 = vunpack.c.h.b16 %v166
    %v279 = vunpack.c.l.b16 %v167
    %v280 = vunpack.c.h.b16 %v167
    %v281 = vunpack.c.l.b16 %v168
    %v282 = vunpack.c.h.b16 %v168
    %v283 = vunpack.c.l.b16 %v169
    %v284 = vunpack.c.h.b16 %v169
    %v285 = vunpack.c.l.b16 %v170
    %v286 = vunpack.c.h.b16 %v170
    %v287 = vunpack.c.l.b16 %v171
    %v288 = vunpack.c.h.b16 %v171
    %v289 = vunpack.c.l.b16 %v172
    %v290 = vunpack.c.h.b16 %v172
    %v291 = vpack.c.b16 %v231, %v227
    %v292 = vpack.c.b16 %v232, %v228
    %v293 = vpack.c.b16 %v233, %v229
    %v294 = vpack.c.b16 %v234, %v230
    %v295 = vpack.c.b16 %v239, %v235
    %v296 = vpack.c.b16 %v240, %v236
    %v297 = vpack.c.b16 %v241, %v237
    %v298 = vpack.c.b16 %v242, %v238
    %v299 = vpack.c.b16 %v247, %v243
    %v300 = vpack.c.b16 %v248, %v244
    %v301 = vpack.c.b16 %v249, %v245
    %v302 = vpack.c.b16 %v250, %v246
    %v303 = vpack.c.b16 %v255, %v251
    %v304 = vpack.c.b16 %v256, %v252
    %v305 = vpack.c.b16 %v257, %v253
    %v306 = vpack.c.b16 %v258, %v254
    %v307 = vpack.c.b16 %v263, %v259
    %v308 = vpack.c.b16 %v264, %v260
    %v309 = vpack.c.b16 %v265, %v261
    %v310 = vpack.c.b16 %v266, %v262
    %v311 = vpack.c.b16 %v271, %v267
    %v312 = vpack.c.b16 %v272, %v268
    %v313 = vpack.c.b16 %v273, %v269
    %v314 = vpack.c.b16 %v274, %v270
    %v315 = vpack.c.b16 %v279, %v275
    %v316 = vpack.c.b16 %v280, %v276
    %v317 = vpack.c.b16 %v281, %v277
    %v318 = vpack.c.b16 %v282, %v278
    %v319 = vpack.c.b16 %v287, %v283
    %v320 = vpack.c.b16 %v288, %v284
    %v321 = vpack.c.b16 %v289, %v285
    %v322 = vpack.c.b16 %v290, %v286
    %355 = vmatprep.subr.bf16.mxu0 %v320
    %356 = vmatpush1.bf16.msra.mxu0 %v319
    %357 = vmatprep.subr.bf16.mxu0 %v316
    %358 = vmatpush1.bf16.msra.mxu0 %v315
    %359 = vmatprep.subr.bf16.mxu0 %v312
    %360 = vmatpush1.bf16.msra.mxu0 %v311
    %361 = vmatprep.subr.bf16.mxu0 %v308
    %362 = vmatpush1.bf16.msra.mxu0 %v307
    %363 = vmatprep.subr.bf16.mxu0 %v304
    %364 = vmatpush1.bf16.msra.mxu0 %v303
    %365 = vmatprep.subr.bf16.mxu0 %v300
    %366 = vmatpush1.bf16.msra.mxu0 %v299
    %367 = vmatprep.subr.bf16.mxu0 %v296
    %368 = vmatpush1.bf16.msra.mxu0 %v295
    %369 = vmatprep.subr.bf16.mxu0 %v292
    %370 = vmatpush1.bf16.msra.mxu0 %v291
    %371 = vmatprep.subr.bf16.mxu0 0
    %372 = vmatpush2.bf16.msra.mxu0 0
    %373 = vmatprep.subr.bf16.mxu0 0
    %374 = vmatpush2.bf16.msra.mxu0 0
    %375 = vmatprep.subr.bf16.mxu0 0
    %376 = vmatpush2.bf16.msra.mxu0 0
    %377 = vmatprep.subr.bf16.mxu0 0
    %378 = vmatpush2.bf16.msra.mxu0 0
    %379 = vmatprep.subr.bf16.mxu0 0
    %380 = vmatpush2.bf16.msra.mxu0 0
    %381 = vmatprep.subr.bf16.mxu0 0
    %382 = vmatpush2.bf16.msra.mxu0 0
    %383 = vmatprep.subr.bf16.mxu0 0
    %384 = vmatpush2.bf16.msra.mxu0 0
    %385 = vmatprep.subr.bf16.mxu0 0
    %386 = vmatpush2.bf16.msra.mxu0 0
    %387 = vmatprep.mubr.bf16.mxu0 0
    %388 = vmatmul.mubr.bf16.gmra.mxu0 %v125
    %v389 = vpop.f32.mrf.mxu0
    %v390 = vadd.f32 %v178, %v389
    %v391 = vpop.f32.mrf.mxu0
    %v392 = vadd.f32 %v182, %v391
    %v393 = vpop.f32.mrf.mxu0
    %v394 = vadd.f32 %v178, %v393
    %v395 = vpop.f32.mrf.mxu0
    %v396 = vadd.f32 %v182, %v395
    %397 = vmatprep.mubr.bf16.mxu0 0
    %398 = vmatmul.mubr.bf16.gmra.mxu0 %v126
    %v399 = vpop.f32.mrf.mxu0
    %v400 = vadd.f32 %v178, %v399
    %v401 = vpop.f32.mrf.mxu0
    %v402 = vadd.f32 %v182, %v401
    %v403 = vpop.f32.mrf.mxu0
    %v404 = vadd.f32 %v178, %v403
    %v405 = vpop.f32.mrf.mxu0
    %v406 = vadd.f32 %v182, %v405
    %407 = vmatprep.mubr.bf16.mxu0 0
    %408 = vmatmul.mubr.bf16.gmra.mxu0 %v127
    %v409 = vpop.f32.mrf.mxu0
    %v410 = vadd.f32 %v178, %v409
    %v411 = vpop.f32.mrf.mxu0
    %v412 = vadd.f32 %v182, %v411
    %v413 = vpop.f32.mrf.mxu0
    %v414 = vadd.f32 %v178, %v413
    %v415 = vpop.f32.mrf.mxu0
    %v416 = vadd.f32 %v182, %v415
    %417 = vmatprep.mubr.bf16.mxu0 0
    %418 = vmatmul.mubr.bf16.gmra.mxu0 %v128
    %v419 = vpop.f32.mrf.mxu0
    %v420 = vadd.f32 %v178, %v419
    %v421 = vpop.f32.mrf.mxu0
    %v422 = vadd.f32 %v182, %v421
    %v423 = vpop.f32.mrf.mxu0
    %v424 = vadd.f32 %v178, %v423
    %v425 = vpop.f32.mrf.mxu0
    %v426 = vadd.f32 %v182, %v425
    %427 = vmatprep.mubr.bf16.mxu0 0
    %428 = vmatmul.mubr.bf16.gmra.mxu0 %v129
    %v429 = vpop.f32.mrf.mxu0
    %v430 = vadd.f32 %v178, %v429
    %v431 = vpop.f32.mrf.mxu0
    %v432 = vadd.f32 %v182, %v431
    %v433 = vpop.f32.mrf.mxu0
    %v434 = vadd.f32 %v178, %v433
    %v435 = vpop.f32.mrf.mxu0
    %v436 = vadd.f32 %v182, %v435
    %437 = vmatprep.mubr.bf16.mxu0 0
    %438 = vmatmul.mubr.bf16.gmra.mxu0 %v130
    %v439 = vpop.f32.mrf.mxu0
    %v440 = vadd.f32 %v178, %v439
    %v441 = vpop.f32.mrf.mxu0
    %v442 = vadd.f32 %v182, %v441
    %v443 = vpop.f32.mrf.mxu0
    %v444 = vadd.f32 %v178, %v443
    %v445 = vpop.f32.mrf.mxu0
    %v446 = vadd.f32 %v182, %v445
    %447 = vmatprep.mubr.bf16.mxu0 0
    %448 = vmatmul.mubr.bf16.gmra.mxu0 %v131
    %v449 = vpop.f32.mrf.mxu0
    %v450 = vadd.f32 %v178, %v449
    %v451 = vpop.f32.mrf.mxu0
    %v452 = vadd.f32 %v182, %v451
    %v453 = vpop.f32.mrf.mxu0
    %v454 = vadd.f32 %v178, %v453
    %v455 = vpop.f32.mrf.mxu0
    %v456 = vadd.f32 %v182, %v455
    %457 = vmatprep.mubr.bf16.mxu0 0
    %458 = vmatmul.mubr.bf16.gmra.mxu0 %v132
    %v459 = vpop.f32.mrf.mxu0
    %v460 = vadd.f32 %v178, %v459
    %v461 = vpop.f32.mrf.mxu0
    %v462 = vadd.f32 %v182, %v461
    %v463 = vpop.f32.mrf.mxu0
    %v464 = vadd.f32 %v178, %v463
    %v465 = vpop.f32.mrf.mxu0
    %v466 = vadd.f32 %v182, %v465
    %467 = vmatprep.mubr.bf16.mxu0 0
    %468 = vmatmul.mubr.bf16.gmra.mxu0 %v133
    %v469 = vpop.f32.mrf.mxu0
    %v470 = vadd.f32 %v178, %v469
    %v471 = vpop.f32.mrf.mxu0
    %v472 = vadd.f32 %v182, %v471
    %v473 = vpop.f32.mrf.mxu0
    %v474 = vadd.f32 %v178, %v473
    %v475 = vpop.f32.mrf.mxu0
    %v476 = vadd.f32 %v182, %v475
    %477 = vmatprep.mubr.bf16.mxu0 0
    %478 = vmatmul.mubr.bf16.gmra.mxu0 %v134
    %v479 = vpop.f32.mrf.mxu0
    %v480 = vadd.f32 %v178, %v479
    %v481 = vpop.f32.mrf.mxu0
    %v482 = vadd.f32 %v182, %v481
    %v483 = vpop.f32.mrf.mxu0
    %v484 = vadd.f32 %v178, %v483
    %v485 = vpop.f32.mrf.mxu0
    %v486 = vadd.f32 %v182, %v485
    %487 = vmatprep.mubr.bf16.mxu0 0
    %488 = vmatmul.mubr.bf16.gmra.mxu0 %v135
    %v489 = vpop.f32.mrf.mxu0
    %v490 = vadd.f32 %v178, %v489
    %v491 = vpop.f32.mrf.mxu0
    %v492 = vadd.f32 %v182, %v491
    %v493 = vpop.f32.mrf.mxu0
    %v494 = vadd.f32 %v178, %v493
    %v495 = vpop.f32.mrf.mxu0
    %v496 = vadd.f32 %v182, %v495
    %497 = vmatprep.mubr.bf16.mxu0 0
    %498 = vmatmul.mubr.bf16.gmra.mxu0 %v136
    %v499 = vpop.f32.mrf.mxu0
    %v500 = vadd.f32 %v178, %v499
    %v501 = vpop.f32.mrf.mxu0
    %v502 = vadd.f32 %v182, %v501
    %v503 = vpop.f32.mrf.mxu0
    %v504 = vadd.f32 %v178, %v503
    %v505 = vpop.f32.mrf.mxu0
    %v506 = vadd.f32 %v182, %v505
    %507 = vmatprep.mubr.bf16.mxu0 0
    %508 = vmatmul.mubr.bf16.gmra.mxu0 %v137
    %v509 = vpop.f32.mrf.mxu0
    %v510 = vadd.f32 %v178, %v509
    %v511 = vpop.f32.mrf.mxu0
    %v512 = vadd.f32 %v182, %v511
    %v513 = vpop.f32.mrf.mxu0
    %v514 = vadd.f32 %v178, %v513
    %v515 = vpop.f32.mrf.mxu0
    %v516 = vadd.f32 %v182, %v515
    %517 = vmatprep.mubr.bf16.mxu0 0
    %518 = vmatmul.mubr.bf16.gmra.mxu0 %v138
    %v519 = vpop.f32.mrf.mxu0
    %v520 = vadd.f32 %v178, %v519
    %v521 = vpop.f32.mrf.mxu0
    %v522 = vadd.f32 %v182, %v521
    %v523 = vpop.f32.mrf.mxu0
    %v524 = vadd.f32 %v178, %v523
    %v525 = vpop.f32.mrf.mxu0
    %v526 = vadd.f32 %v182, %v525
    %527 = vmatprep.mubr.bf16.mxu0 0
    %528 = vmatmul.mubr.bf16.gmra.mxu0 %v139
    %v529 = vpop.f32.mrf.mxu0
    %v530 = vadd.f32 %v178, %v529
    %v531 = vpop.f32.mrf.mxu0
    %v532 = vadd.f32 %v182, %v531
    %v533 = vpop.f32.mrf.mxu0
    %v534 = vadd.f32 %v178, %v533
    %v535 = vpop.f32.mrf.mxu0
    %v536 = vadd.f32 %v182, %v535
    %537 = vmatprep.mubr.bf16.mxu0 0
    %538 = vmatmul.mubr.bf16.gmra.mxu0 %v140
    %v539 = vpop.f32.mrf.mxu0
    %v540 = vadd.f32 %v178, %v539
    %v541 = vpop.f32.mrf.mxu0
    %v542 = vadd.f32 %v182, %v541
    %v543 = vpop.f32.mrf.mxu0
    %v544 = vadd.f32 %v178, %v543
    %v545 = vpop.f32.mrf.mxu0
    %v546 = vadd.f32 %v182, %v545
    %547 = vdwg.mxu0
    %548 = vmatprep.subr.bf16.mxu0 %v322
    %549 = vmatpush1.bf16.msra.mxu0 %v321
    %550 = vmatprep.subr.bf16.mxu0 %v318
    %551 = vmatpush1.bf16.msra.mxu0 %v317
    %552 = vmatprep.subr.bf16.mxu0 %v314
    %553 = vmatpush1.bf16.msra.mxu0 %v313
    %554 = vmatprep.subr.bf16.mxu0 %v310
    %555 = vmatpush1.bf16.msra.mxu0 %v309
    %556 = vmatprep.subr.bf16.mxu0 %v306
    %557 = vmatpush1.bf16.msra.mxu0 %v305
    %558 = vmatprep.subr.bf16.mxu0 %v302
    %559 = vmatpush1.bf16.msra.mxu0 %v301
    %560 = vmatprep.subr.bf16.mxu0 %v298
    %561 = vmatpush1.bf16.msra.mxu0 %v297
    %562 = vmatprep.subr.bf16.mxu0 %v294
    %563 = vmatpush1.bf16.msra.mxu0 %v293
    %564 = vmatprep.subr.bf16.mxu0 0
    %565 = vmatpush2.bf16.msra.mxu0 0
    %566 = vmatprep.subr.bf16.mxu0 0
    %567 = vmatpush2.bf16.msra.mxu0 0
    %568 = vmatprep.subr.bf16.mxu0 0
    %569 = vmatpush2.bf16.msra.mxu0 0
    %570 = vmatprep.subr.bf16.mxu0 0
    %571 = vmatpush2.bf16.msra.mxu0 0
    %572 = vmatprep.subr.bf16.mxu0 0
    %573 = vmatpush2.bf16.msra.mxu0 0
    %574 = vmatprep.subr.bf16.mxu0 0
    %575 = vmatpush2.bf16.msra.mxu0 0
    %576 = vmatprep.subr.bf16.mxu0 0
    %577 = vmatpush2.bf16.msra.mxu0 0
    %578 = vmatprep.subr.bf16.mxu0 0
    %579 = vmatpush2.bf16.msra.mxu0 0
    %580 = vmatprep.mubr.bf16.mxu0 0
    %581 = vmatmul.mubr.bf16.gmra.mxu0 %v125
    %v582 = vpop.f32.mrf.mxu0
    %v583 = vadd.f32 %v186, %v582
    %v584 = vpop.f32.mrf.mxu0
    %v585 = vadd.f32 %v190, %v584
    %v586 = vpop.f32.mrf.mxu0
    %v587 = vadd.f32 %v186, %v586
    %v588 = vpop.f32.mrf.mxu0
    %v589 = vadd.f32 %v190, %v588
    %590 = vmatprep.mubr.bf16.mxu0 0
    %591 = vmatmul.mubr.bf16.gmra.mxu0 %v126
    %v592 = vpop.f32.mrf.mxu0
    %v593 = vadd.f32 %v186, %v592
    %v594 = vpop.f32.mrf.mxu0
    %v595 = vadd.f32 %v190, %v594
    %v596 = vpop.f32.mrf.mxu0
    %v597 = vadd.f32 %v186, %v596
    %v598 = vpop.f32.mrf.mxu0
    %v599 = vadd.f32 %v190, %v598
    %600 = vmatprep.mubr.bf16.mxu0 0
    %601 = vmatmul.mubr.bf16.gmra.mxu0 %v127
    %v602 = vpop.f32.mrf.mxu0
    %v603 = vadd.f32 %v186, %v602
    %v604 = vpop.f32.mrf.mxu0
    %v605 = vadd.f32 %v190, %v604
    %v606 = vpop.f32.mrf.mxu0
    %v607 = vadd.f32 %v186, %v606
    %v608 = vpop.f32.mrf.mxu0
    %v609 = vadd.f32 %v190, %v608
    %610 = vmatprep.mubr.bf16.mxu0 0
    %611 = vmatmul.mubr.bf16.gmra.mxu0 %v128
    %v612 = vpop.f32.mrf.mxu0
    %v613 = vadd.f32 %v186, %v612
    %v614 = vpop.f32.mrf.mxu0
    %v615 = vadd.f32 %v190, %v614
    %v616 = vpop.f32.mrf.mxu0
    %v617 = vadd.f32 %v186, %v616
    %v618 = vpop.f32.mrf.mxu0
    %v619 = vadd.f32 %v190, %v618
    %620 = vmatprep.mubr.bf16.mxu0 0
    %621 = vmatmul.mubr.bf16.gmra.mxu0 %v129
    %v622 = vpop.f32.mrf.mxu0
    %v623 = vadd.f32 %v186, %v622
    %v624 = vpop.f32.mrf.mxu0
    %v625 = vadd.f32 %v190, %v624
    %v626 = vpop.f32.mrf.mxu0
    %v627 = vadd.f32 %v186, %v626
    %v628 = vpop.f32.mrf.mxu0
    %v629 = vadd.f32 %v190, %v628
    %630 = vmatprep.mubr.bf16.mxu0 0
    %631 = vmatmul.mubr.bf16.gmra.mxu0 %v130
    %v632 = vpop.f32.mrf.mxu0
    %v633 = vadd.f32 %v186, %v632
    %v634 = vpop.f32.mrf.mxu0
    %v635 = vadd.f32 %v190, %v634
    %v636 = vpop.f32.mrf.mxu0
    %v637 = vadd.f32 %v186, %v636
    %v638 = vpop.f32.mrf.mxu0
    %v639 = vadd.f32 %v190, %v638
    %640 = vmatprep.mubr.bf16.mxu0 0
    %641 = vmatmul.mubr.bf16.gmra.mxu0 %v131
    %v642 = vpop.f32.mrf.mxu0
    %v643 = vadd.f32 %v186, %v642
    %v644 = vpop.f32.mrf.mxu0
    %v645 = vadd.f32 %v190, %v644
    %v646 = vpop.f32.mrf.mxu0
    %v647 = vadd.f32 %v186, %v646
    %v648 = vpop.f32.mrf.mxu0
    %v649 = vadd.f32 %v190, %v648
    %650 = vmatprep.mubr.bf16.mxu0 0
    %651 = vmatmul.mubr.bf16.gmra.mxu0 %v132
    %v652 = vpop.f32.mrf.mxu0
    %v653 = vadd.f32 %v186, %v652
    %v654 = vpop.f32.mrf.mxu0
    %v655 = vadd.f32 %v190, %v654
    %v656 = vpop.f32.mrf.mxu0
    %v657 = vadd.f32 %v186, %v656
    %v658 = vpop.f32.mrf.mxu0
    %v659 = vadd.f32 %v190, %v658
    %660 = vmatprep.mubr.bf16.mxu0 0
    %661 = vmatmul.mubr.bf16.gmra.mxu0 %v133
    %v662 = vpop.f32.mrf.mxu0
    %v663 = vadd.f32 %v186, %v662
    %v664 = vpop.f32.mrf.mxu0
    %v665 = vadd.f32 %v190, %v664
    %v666 = vpop.f32.mrf.mxu0
    %v667 = vadd.f32 %v186, %v666
    %v668 = vpop.f32.mrf.mxu0
    %v669 = vadd.f32 %v190, %v668
    %670 = vmatprep.mubr.bf16.mxu0 0
    %671 = vmatmul.mubr.bf16.gmra.mxu0 %v134
    %v672 = vpop.f32.mrf.mxu0
    %v673 = vadd.f32 %v186, %v672
    %v674 = vpop.f32.mrf.mxu0
    %v675 = vadd.f32 %v190, %v674
    %v676 = vpop.f32.mrf.mxu0
    %v677 = vadd.f32 %v186, %v676
    %v678 = vpop.f32.mrf.mxu0
    %v679 = vadd.f32 %v190, %v678
    %680 = vmatprep.mubr.bf16.mxu0 0
    %681 = vmatmul.mubr.bf16.gmra.mxu0 %v135
    %v682 = vpop.f32.mrf.mxu0
    %v683 = vadd.f32 %v186, %v682
    %v684 = vpop.f32.mrf.mxu0
    %v685 = vadd.f32 %v190, %v684
    %v686 = vpop.f32.mrf.mxu0
    %v687 = vadd.f32 %v186, %v686
    %v688 = vpop.f32.mrf.mxu0
    %v689 = vadd.f32 %v190, %v688
    %690 = vmatprep.mubr.bf16.mxu0 0
    %691 = vmatmul.mubr.bf16.gmra.mxu0 %v136
    %v692 = vpop.f32.mrf.mxu0
    %v693 = vadd.f32 %v186, %v692
    %v694 = vpop.f32.mrf.mxu0
    %v695 = vadd.f32 %v190, %v694
    %v696 = vpop.f32.mrf.mxu0
    %v697 = vadd.f32 %v186, %v696
    %v698 = vpop.f32.mrf.mxu0
    %v699 = vadd.f32 %v190, %v698
    %700 = vmatprep.mubr.bf16.mxu0 0
    %701 = vmatmul.mubr.bf16.gmra.mxu0 %v137
    %v702 = vpop.f32.mrf.mxu0
    %v703 = vadd.f32 %v186, %v702
    %v704 = vpop.f32.mrf.mxu0
    %v705 = vadd.f32 %v190, %v704
    %v706 = vpop.f32.mrf.mxu0
    %v707 = vadd.f32 %v186, %v706
    %v708 = vpop.f32.mrf.mxu0
    %v709 = vadd.f32 %v190, %v708
    %710 = vmatprep.mubr.bf16.mxu0 0
    %711 = vmatmul.mubr.bf16.gmra.mxu0 %v138
    %v712 = vpop.f32.mrf.mxu0
    %v713 = vadd.f32 %v186, %v712
    %v714 = vpop.f32.mrf.mxu0
    %v715 = vadd.f32 %v190, %v714
    %v716 = vpop.f32.mrf.mxu0
    %v717 = vadd.f32 %v186, %v716
    %v718 = vpop.f32.mrf.mxu0
    %v719 = vadd.f32 %v190, %v718
    %720 = vmatprep.mubr.bf16.mxu0 0
    %721 = vmatmul.mubr.bf16.gmra.mxu0 %v139
    %v722 = vpop.f32.mrf.mxu0
    %v723 = vadd.f32 %v186, %v722
    %v724 = vpop.f32.mrf.mxu0
    %v725 = vadd.f32 %v190, %v724
    %v726 = vpop.f32.mrf.mxu0
    %v727 = vadd.f32 %v186, %v726
    %v728 = vpop.f32.mrf.mxu0
    %v729 = vadd.f32 %v190, %v728
    %730 = vmatprep.mubr.bf16.mxu0 0
    %731 = vmatmul.mubr.bf16.gmra.mxu0 %v140
    %v732 = vpop.f32.mrf.mxu0
    %v733 = vadd.f32 %v186, %v732
    %v734 = vpop.f32.mrf.mxu0
    %v735 = vadd.f32 %v190, %v734
    %v736 = vpop.f32.mrf.mxu0
    %v737 = vadd.f32 %v186, %v736
    %v738 = vpop.f32.mrf.mxu0
    %v739 = vadd.f32 %v190, %v738
    %740 = vdwg.mxu0
    %v741 = vmax.f32 %v390, 0.0
    %v742 = vmax.f32 %v392, 0.0
    %v743 = vmax.f32 %v583, 0.0
    %v744 = vmax.f32 %v585, 0.0
    %v745 = vmax.f32 %v394, 0.0
    %v746 = vmax.f32 %v396, 0.0
    %v747 = vmax.f32 %v587, 0.0
    %v748 = vmax.f32 %v589, 0.0
    %v749 = vmax.f32 %v400, 0.0
    %v750 = vmax.f32 %v402, 0.0
    %v751 = vmax.f32 %v593, 0.0
    %v752 = vmax.f32 %v595, 0.0
    %v753 = vmax.f32 %v404, 0.0
    %v754 = vmax.f32 %v406, 0.0
    %v755 = vmax.f32 %v597, 0.0
    %v756 = vmax.f32 %v599, 0.0
    %v757 = vmax.f32 %v410, 0.0
    %v758 = vmax.f32 %v412, 0.0
    %v759 = vmax.f32 %v603, 0.0
    %v760 = vmax.f32 %v605, 0.0
    %v761 = vmax.f32 %v414, 0.0
    %v762 = vmax.f32 %v416, 0.0
    %v763 = vmax.f32 %v607, 0.0
    %v764 = vmax.f32 %v609, 0.0
    %v765 = vmax.f32 %v420, 0.0
    %v766 = vmax.f32 %v422, 0.0
    %v767 = vmax.f32 %v613, 0.0
    %v768 = vmax.f32 %v615, 0.0
    %v769 = vmax.f32 %v424, 0.0
    %v770 = vmax.f32 %v426, 0.0
    %v771 = vmax.f32 %v617, 0.0
    %v772 = vmax.f32 %v619, 0.0
    %v773 = vmax.f32 %v430, 0.0
    %v774 = vmax.f32 %v432, 0.0
    %v775 = vmax.f32 %v623, 0.0
    %v776 = vmax.f32 %v625, 0.0
    %v777 = vmax.f32 %v434, 0.0
    %v778 = vmax.f32 %v436, 0.0
    %v779 = vmax.f32 %v627, 0.0
    %v780 = vmax.f32 %v629, 0.0
    %v781 = vmax.f32 %v440, 0.0
    %v782 = vmax.f32 %v442, 0.0
    %v783 = vmax.f32 %v633, 0.0
    %v784 = vmax.f32 %v635, 0.0
    %v785 = vmax.f32 %v444, 0.0
    %v786 = vmax.f32 %v446, 0.0
    %v787 = vmax.f32 %v637, 0.0
    %v788 = vmax.f32 %v639, 0.0
    %v789 = vmax.f32 %v450, 0.0
    %v790 = vmax.f32 %v452, 0.0
    %v791 = vmax.f32 %v643, 0.0
    %v792 = vmax.f32 %v645, 0.0
    %v793 = vmax.f32 %v454, 0.0
    %v794 = vmax.f32 %v456, 0.0
    %v795 = vmax.f32 %v647, 0.0
    %v796 = vmax.f32 %v649, 0.0
    %v797 = vmax.f32 %v460, 0.0
    %v798 = vmax.f32 %v462, 0.0
    %v799 = vmax.f32 %v653, 0.0
    %v800 = vmax.f32 %v655, 0.0
    %v801 = vmax.f32 %v464, 0.0
    %v802 = vmax.f32 %v466, 0.0
    %v803 = vmax.f32 %v657, 0.0
    %v804 = vmax.f32 %v659, 0.0
    %v805 = vmax.f32 %v470, 0.0
    %v806 = vmax.f32 %v472, 0.0
    %v807 = vmax.f32 %v663, 0.0
    %v808 = vmax.f32 %v665, 0.0
    %v809 = vmax.f32 %v474, 0.0
    %v810 = vmax.f32 %v476, 0.0
    %v811 = vmax.f32 %v667, 0.0
    %v812 = vmax.f32 %v669, 0.0
    %v813 = vmax.f32 %v480, 0.0
    %v814 = vmax.f32 %v482, 0.0
    %v815 = vmax.f32 %v673, 0.0
    %v816 = vmax.f32 %v675, 0.0
    %v817 = vmax.f32 %v484, 0.0
    %v818 = vmax.f32 %v486, 0.0
    %v819 = vmax.f32 %v677, 0.0
    %v820 = vmax.f32 %v679, 0.0
    %v821 = vmax.f32 %v490, 0.0
    %v822 = vmax.f32 %v492, 0.0
    %v823 = vmax.f32 %v683, 0.0
    %v824 = vmax.f32 %v685, 0.0
    %v825 = vmax.f32 %v494, 0.0
    %v826 = vmax.f32 %v496, 0.0
    %v827 = vmax.f32 %v687, 0.0
    %v828 = vmax.f32 %v689, 0.0
    %v829 = vmax.f32 %v500, 0.0
    %v830 = vmax.f32 %v502, 0.0
    %v831 = vmax.f32 %v693, 0.0
    %v832 = vmax.f32 %v695, 0.0
    %v833 = vmax.f32 %v504, 0.0
    %v834 = vmax.f32 %v506, 0.0
    %v835 = vmax.f32 %v697, 0.0
    %v836 = vmax.f32 %v699, 0.0
    %v837 = vmax.f32 %v510, 0.0
    %v838 = vmax.f32 %v512, 0.0
    %v839 = vmax.f32 %v703, 0.0
    %v840 = vmax.f32 %v705, 0.0
    %v841 = vmax.f32 %v514, 0.0
    %v842 = vmax.f32 %v516, 0.0
    %v843 = vmax.f32 %v707, 0.0
    %v844 = vmax.f32 %v709, 0.0
    %v845 = vmax.f32 %v520, 0.0
    %v846 = vmax.f32 %v522, 0.0
    %v847 = vmax.f32 %v713, 0.0
    %v848 = vmax.f32 %v715, 0.0
    %v849 = vmax.f32 %v524, 0.0
    %v850 = vmax.f32 %v526, 0.0
    %v851 = vmax.f32 %v717, 0.0
    %v852 = vmax.f32 %v719, 0.0
    %v853 = vmax.f32 %v530, 0.0
    %v854 = vmax.f32 %v532, 0.0
    %v855 = vmax.f32 %v723, 0.0
    %v856 = vmax.f32 %v725, 0.0
    %v857 = vmax.f32 %v534, 0.0
    %v858 = vmax.f32 %v536, 0.0
    %v859 = vmax.f32 %v727, 0.0
    %v860 = vmax.f32 %v729, 0.0
    %v861 = vmax.f32 %v540, 0.0
    %v862 = vmax.f32 %v542, 0.0
    %v863 = vmax.f32 %v733, 0.0
    %v864 = vmax.f32 %v735, 0.0
    %v865 = vmax.f32 %v544, 0.0
    %v866 = vmax.f32 %v546, 0.0
    %v867 = vmax.f32 %v737, 0.0
    %v868 = vmax.f32 %v739, 0.0
    %v869 = vpack.c.bf16 %v745, %v741
    %v870 = vpack.c.bf16 %v746, %v742
    %v871 = vpack.c.bf16 %v747, %v743
    %v872 = vpack.c.bf16 %v748, %v744
    %v873 = vpack.c.bf16 %v753, %v749
    %v874 = vpack.c.bf16 %v754, %v750
    %v875 = vpack.c.bf16 %v755, %v751
    %v876 = vpack.c.bf16 %v756, %v752
    %v877 = vpack.c.bf16 %v761, %v757
    %v878 = vpack.c.bf16 %v762, %v758
    %v879 = vpack.c.bf16 %v763, %v759
    %v880 = vpack.c.bf16 %v764, %v760
    %v881 = vpack.c.bf16 %v769, %v765
    %v882 = vpack.c.bf16 %v770, %v766
    %v883 = vpack.c.bf16 %v771, %v767
    %v884 = vpack.c.bf16 %v772, %v768
    %v885 = vpack.c.bf16 %v777, %v773
    %v886 = vpack.c.bf16 %v778, %v774
    %v887 = vpack.c.bf16 %v779, %v775
    %v888 = vpack.c.bf16 %v780, %v776
    %v889 = vpack.c.bf16 %v785, %v781
    %v890 = vpack.c.bf16 %v786, %v782
    %v891 = vpack.c.bf16 %v787, %v783
    %v892 = vpack.c.bf16 %v788, %v784
    %v893 = vpack.c.bf16 %v793, %v789
    %v894 = vpack.c.bf16 %v794, %v790
    %v895 = vpack.c.bf16 %v795, %v791
    %v896 = vpack.c.bf16 %v796, %v792
    %v897 = vpack.c.bf16 %v801, %v797
    %v898 = vpack.c.bf16 %v802, %v798
    %v899 = vpack.c.bf16 %v803, %v799
    %v900 = vpack.c.bf16 %v804, %v800
    %v901 = vpack.c.bf16 %v809, %v805
    %v902 = vpack.c.bf16 %v810, %v806
    %v903 = vpack.c.bf16 %v811, %v807
    %v904 = vpack.c.bf16 %v812, %v808
    %v905 = vpack.c.bf16 %v817, %v813
    %v906 = vpack.c.bf16 %v818, %v814
    %v907 = vpack.c.bf16 %v819, %v815
    %v908 = vpack.c.bf16 %v820, %v816
    %v909 = vpack.c.bf16 %v825, %v821
    %v910 = vpack.c.bf16 %v826, %v822
    %v911 = vpack.c.bf16 %v827, %v823
    %v912 = vpack.c.bf16 %v828, %v824
    %v913 = vpack.c.bf16 %v833, %v829
    %v914 = vpack.c.bf16 %v834, %v830
    %v915 = vpack.c.bf16 %v835, %v831
    %v916 = vpack.c.bf16 %v836, %v832
    %v917 = vpack.c.bf16 %v841, %v837
    %v918 = vpack.c.bf16 %v842, %v838
    %v919 = vpack.c.bf16 %v843, %v839
    %v920 = vpack.c.bf16 %v844, %v840
    %v921 = vpack.c.bf16 %v849, %v845
    %v922 = vpack.c.bf16 %v850, %v846
    %v923 = vpack.c.bf16 %v851, %v847
    %v924 = vpack.c.bf16 %v852, %v848
    %v925 = vpack.c.bf16 %v857, %v853
    %v926 = vpack.c.bf16 %v858, %v854
    %v927 = vpack.c.bf16 %v859, %v855
    %v928 = vpack.c.bf16 %v860, %v856
    %v929 = vpack.c.bf16 %v865, %v861
    %v930 = vpack.c.bf16 %v866, %v862
    %v931 = vpack.c.bf16 %v867, %v863
    %v932 = vpack.c.bf16 %v868, %v864
    %v933 = vld [vmem:[#allocation7] sm:$0xff]
    %v934 = vld [vmem:[#allocation7 + $0x8] sm:$0xff]
    %v935 = vld [vmem:[#allocation7 + $0x10] sm:$0xff]
    %v936 = vld [vmem:[#allocation7 + $0x18] sm:$0xff]
    %v937 = vld [vmem:[#allocation7 + $0x20] sm:$0xff]
    %v938 = vld [vmem:[#allocation7 + $0x28] sm:$0xff]
    %v939 = vld [vmem:[#allocation7 + $0x30] sm:$0xff]
    %v940 = vld [vmem:[#allocation7 + $0x38] sm:$0xff]
    %v941 = vld [vmem:[#allocation7 + $0x40] sm:$0xff]
    %v942 = vld [vmem:[#allocation7 + $0x48] sm:$0xff]
    %v943 = vld [vmem:[#allocation7 + $0x50] sm:$0xff]
    %v944 = vld [vmem:[#allocation7 + $0x58] sm:$0xff]
    %v945 = vld [vmem:[#allocation7 + $0x60] sm:$0xff]
    %v946 = vld [vmem:[#allocation7 + $0x68] sm:$0xff]
    %v947 = vld [vmem:[#allocation7 + $0x70] sm:$0xff]
    %v948 = vld [vmem:[#allocation7 + $0x78] sm:$0xff]
    %v949 = vld [vmem:[#allocation7 + $0x80] sm:$0xff]
    %v950 = vld [vmem:[#allocation7 + $0x88] sm:$0xff]
    %v951 = vld [vmem:[#allocation7 + $0x90] sm:$0xff]
    %v952 = vld [vmem:[#allocation7 + $0x98] sm:$0xff]
    %v953 = vld [vmem:[#allocation7 + $0xa0] sm:$0xff]
    %v954 = vld [vmem:[#allocation7 + $0xa8] sm:$0xff]
    %v955 = vld [vmem:[#allocation7 + $0xb0] sm:$0xff]
    %v956 = vld [vmem:[#allocation7 + $0xb8] sm:$0xff]
    %v957 = vld [vmem:[#allocation7 + $0xc0] sm:$0xff]
    %v958 = vld [vmem:[#allocation7 + $0xc8] sm:$0xff]
    %v959 = vld [vmem:[#allocation7 + $0xd0] sm:$0xff]
    %v960 = vld [vmem:[#allocation7 + $0xd8] sm:$0xff]
    %v961 = vld [vmem:[#allocation7 + $0xe0] sm:$0xff]
    %v962 = vld [vmem:[#allocation7 + $0xe8] sm:$0xff]
    %v963 = vld [vmem:[#allocation7 + $0xf0] sm:$0xff]
    %v964 = vld [vmem:[#allocation7 + $0xf8] sm:$0xff]
    %v965 = vld [vmem:[#allocation7 + $0x100] sm:$0xff]
    %v966 = vld [vmem:[#allocation7 + $0x108] sm:$0xff]
    %v967 = vld [vmem:[#allocation7 + $0x110] sm:$0xff]
    %v968 = vld [vmem:[#allocation7 + $0x118] sm:$0xff]
    %v969 = vld [vmem:[#allocation7 + $0x120] sm:$0xff]
    %v970 = vld [vmem:[#allocation7 + $0x128] sm:$0xff]
    %v971 = vld [vmem:[#allocation7 + $0x130] sm:$0xff]
    %v972 = vld [vmem:[#allocation7 + $0x138] sm:$0xff]
    %v973 = vld [vmem:[#allocation7 + $0x140] sm:$0xff]
    %v974 = vld [vmem:[#allocation7 + $0x148] sm:$0xff]
    %v975 = vld [vmem:[#allocation7 + $0x150] sm:$0xff]
    %v976 = vld [vmem:[#allocation7 + $0x158] sm:$0xff]
    %v977 = vld [vmem:[#allocation7 + $0x160] sm:$0xff]
    %v978 = vld [vmem:[#allocation7 + $0x168] sm:$0xff]
    %v979 = vld [vmem:[#allocation7 + $0x170] sm:$0xff]
    %v980 = vld [vmem:[#allocation7 + $0x178] sm:$0xff]
    %v981 = vld [vmem:[#allocation7 + $0x180] sm:$0xff]
    %v982 = vld [vmem:[#allocation7 + $0x188] sm:$0xff]
    %v983 = vld [vmem:[#allocation7 + $0x190] sm:$0xff]
    %v984 = vld [vmem:[#allocation7 + $0x198] sm:$0xff]
    %v985 = vld [vmem:[#allocation7 + $0x1a0] sm:$0xff]
    %v986 = vld [vmem:[#allocation7 + $0x1a8] sm:$0xff]
    %v987 = vld [vmem:[#allocation7 + $0x1b0] sm:$0xff]
    %v988 = vld [vmem:[#allocation7 + $0x1b8] sm:$0xff]
    %v989 = vld [vmem:[#allocation7 + $0x1c0] sm:$0xff]
    %v990 = vld [vmem:[#allocation7 + $0x1c8] sm:$0xff]
    %v991 = vld [vmem:[#allocation7 + $0x1d0] sm:$0xff]
    %v992 = vld [vmem:[#allocation7 + $0x1d8] sm:$0xff]
    %v993 = vld [vmem:[#allocation7 + $0x1e0] sm:$0xff]
    %v994 = vld [vmem:[#allocation7 + $0x1e8] sm:$0xff]
    %v995 = vld [vmem:[#allocation7 + $0x1f0] sm:$0xff]
    %v996 = vld [vmem:[#allocation7 + $0x1f8] sm:$0xff]
    %v997 = vld [vmem:[%s4] sm:$0x3]
    %v999 = vlaneseq
    %v1000 = vshrl.u32 %v999, 7
    %v1001 = vsub.s32 0, %v1000
    %v1002 = vrot.slane %v997, %v1001
    %v1003 = vlaneseq
    %v1004 = vshrl.u32 %v1003, 7
    %v1005 = vsub.s32 1, %v1004
    %v1006 = vrot.slane %v997, %v1005
    %v1073 = vunpack.c.l.b16 %v933
    %v1074 = vunpack.c.h.b16 %v933
    %v1075 = vunpack.c.l.b16 %v934
    %v1076 = vunpack.c.h.b16 %v934
    %v1077 = vunpack.c.l.b16 %v935
    %v1078 = vunpack.c.h.b16 %v935
    %v1079 = vunpack.c.l.b16 %v936
    %v1080 = vunpack.c.h.b16 %v936
    %v1081 = vunpack.c.l.b16 %v937
    %v1082 = vunpack.c.h.b16 %v937
    %v1083 = vunpack.c.l.b16 %v938
    %v1084 = vunpack.c.h.b16 %v938
    %v1085 = vunpack.c.l.b16 %v939
    %v1086 = vunpack.c.h.b16 %v939
    %v1087 = vunpack.c.l.b16 %v940
    %v1088 = vunpack.c.h.b16 %v940
    %v1089 = vunpack.c.l.b16 %v941
    %v1090 = vunpack.c.h.b16 %v941
    %v1091 = vunpack.c.l.b16 %v942
    %v1092 = vunpack.c.h.b16 %v942
    %v1093 = vunpack.c.l.b16 %v943
    %v1094 = vunpack.c.h.b16 %v943
    %v1095 = vunpack.c.l.b16 %v944
    %v1096 = vunpack.c.h.b16 %v944
    %v1097 = vunpack.c.l.b16 %v945
    %v1098 = vunpack.c.h.b16 %v945
    %v1099 = vunpack.c.l.b16 %v946
    %v1100 = vunpack.c.h.b16 %v946
    %v1101 = vunpack.c.l.b16 %v947
    %v1102 = vunpack.c.h.b16 %v947
    %v1103 = vunpack.c.l.b16 %v948
    %v1104 = vunpack.c.h.b16 %v948
    %v1105 = vunpack.c.l.b16 %v949
    %v1106 = vunpack.c.h.b16 %v949
    %v1107 = vunpack.c.l.b16 %v950
    %v1108 = vunpack.c.h.b16 %v950
    %v1109 = vunpack.c.l.b16 %v951
    %v1110 = vunpack.c.h.b16 %v951
    %v1111 = vunpack.c.l.b16 %v952
    %v1112 = vunpack.c.h.b16 %v952
    %v1113 = vunpack.c.l.b16 %v953
    %v1114 = vunpack.c.h.b16 %v953
    %v1115 = vunpack.c.l.b16 %v954
    %v1116 = vunpack.c.h.b16 %v954
    %v1117 = vunpack.c.l.b16 %v955
    %v1118 = vunpack.c.h.b16 %v955
    %v1119 = vunpack.c.l.b16 %v956
    %v1120 = vunpack.c.h.b16 %v956
    %v1121 = vunpack.c.l.b16 %v957
    %v1122 = vunpack.c.h.b16 %v957
    %v1123 = vunpack.c.l.b16 %v958
    %v1124 = vunpack.c.h.b16 %v958
    %v1125 = vunpack.c.l.b16 %v959
    %v1126 = vunpack.c.h.b16 %v959
    %v1127 = vunpack.c.l.b16 %v960
    %v1128 = vunpack.c.h.b16 %v960
    %v1129 = vunpack.c.l.b16 %v961
    %v1130 = vunpack.c.h.b16 %v961
    %v1131 = vunpack.c.l.b16 %v962
    %v1132 = vunpack.c.h.b16 %v962
    %v1133 = vunpack.c.l.b16 %v963
    %v1134 = vunpack.c.h.b16 %v963
    %v1135 = vunpack.c.l.b16 %v964
    %v1136 = vunpack.c.h.b16 %v964
    %v1137 = vunpack.c.l.b16 %v965
    %v1138 = vunpack.c.h.b16 %v965
    %v1139 = vunpack.c.l.b16 %v966
    %v1140 = vunpack.c.h.b16 %v966
    %v1141 = vunpack.c.l.b16 %v967
    %v1142 = vunpack.c.h.b16 %v967
    %v1143 = vunpack.c.l.b16 %v968
    %v1144 = vunpack.c.h.b16 %v968
    %v1145 = vunpack.c.l.b16 %v969
    %v1146 = vunpack.c.h.b16 %v969
    %v1147 = vunpack.c.l.b16 %v970
    %v1148 = vunpack.c.h.b16 %v970
    %v1149 = vunpack.c.l.b16 %v971
    %v1150 = vunpack.c.h.b16 %v971
    %v1151 = vunpack.c.l.b16 %v972
    %v1152 = vunpack.c.h.b16 %v972
    %v1153 = vunpack.c.l.b16 %v973
    %v1154 = vunpack.c.h.b16 %v973
    %v1155 = vunpack.c.l.b16 %v974
    %v1156 = vunpack.c.h.b16 %v974
    %v1157 = vunpack.c.l.b16 %v975
    %v1158 = vunpack.c.h.b16 %v975
    %v1159 = vunpack.c.l.b16 %v976
    %v1160 = vunpack.c.h.b16 %v976
    %v1161 = vunpack.c.l.b16 %v977
    %v1162 = vunpack.c.h.b16 %v977
    %v1163 = vunpack.c.l.b16 %v978
    %v1164 = vunpack.c.h.b16 %v978
    %v1165 = vunpack.c.l.b16 %v979
    %v1166 = vunpack.c.h.b16 %v979
    %v1167 = vunpack.c.l.b16 %v980
    %v1168 = vunpack.c.h.b16 %v980
    %v1169 = vunpack.c.l.b16 %v981
    %v1170 = vunpack.c.h.b16 %v981
    %v1171 = vunpack.c.l.b16 %v982
    %v1172 = vunpack.c.h.b16 %v982
    %v1173 = vunpack.c.l.b16 %v983
    %v1174 = vunpack.c.h.b16 %v983
    %v1175 = vunpack.c.l.b16 %v984
    %v1176 = vunpack.c.h.b16 %v984
    %v1177 = vunpack.c.l.b16 %v985
    %v1178 = vunpack.c.h.b16 %v985
    %v1179 = vunpack.c.l.b16 %v986
    %v1180 = vunpack.c.h.b16 %v986
    %v1181 = vunpack.c.l.b16 %v987
    %v1182 = vunpack.c.h.b16 %v987
    %v1183 = vunpack.c.l.b16 %v988
    %v1184 = vunpack.c.h.b16 %v988
    %v1185 = vunpack.c.l.b16 %v989
    %v1186 = vunpack.c.h.b16 %v989
    %v1187 = vunpack.c.l.b16 %v990
    %v1188 = vunpack.c.h.b16 %v990
    %v1189 = vunpack.c.l.b16 %v991
    %v1190 = vunpack.c.h.b16 %v991
    %v1191 = vunpack.c.l.b16 %v992
    %v1192 = vunpack.c.h.b16 %v992
    %v1193 = vunpack.c.l.b16 %v993
    %v1194 = vunpack.c.h.b16 %v993
    %v1195 = vunpack.c.l.b16 %v994
    %v1196 = vunpack.c.h.b16 %v994
    %v1197 = vunpack.c.l.b16 %v995
    %v1198 = vunpack.c.h.b16 %v995
    %v1199 = vunpack.c.l.b16 %v996
    %v1200 = vunpack.c.h.b16 %v996
    %v1201 = vpack.c.b16 %v1075, %v1073
    %v1202 = vpack.c.b16 %v1076, %v1074
    %v1203 = vpack.c.b16 %v1079, %v1077
    %v1204 = vpack.c.b16 %v1080, %v1078
    %v1205 = vpack.c.b16 %v1083, %v1081
    %v1206 = vpack.c.b16 %v1084, %v1082
    %v1207 = vpack.c.b16 %v1087, %v1085
    %v1208 = vpack.c.b16 %v1088, %v1086
    %v1209 = vpack.c.b16 %v1091, %v1089
    %v1210 = vpack.c.b16 %v1092, %v1090
    %v1211 = vpack.c.b16 %v1095, %v1093
    %v1212 = vpack.c.b16 %v1096, %v1094
    %v1213 = vpack.c.b16 %v1099, %v1097
    %v1214 = vpack.c.b16 %v1100, %v1098
    %v1215 = vpack.c.b16 %v1103, %v1101
    %v1216 = vpack.c.b16 %v1104, %v1102
    %v1217 = vpack.c.b16 %v1107, %v1105
    %v1218 = vpack.c.b16 %v1108, %v1106
    %v1219 = vpack.c.b16 %v1111, %v1109
    %v1220 = vpack.c.b16 %v1112, %v1110
    %v1221 = vpack.c.b16 %v1115, %v1113
    %v1222 = vpack.c.b16 %v1116, %v1114
    %v1223 = vpack.c.b16 %v1119, %v1117
    %v1224 = vpack.c.b16 %v1120, %v1118
    %v1225 = vpack.c.b16 %v1123, %v1121
    %v1226 = vpack.c.b16 %v1124, %v1122
    %v1227 = vpack.c.b16 %v1127, %v1125
    %v1228 = vpack.c.b16 %v1128, %v1126
    %v1229 = vpack.c.b16 %v1131, %v1129
    %v1230 = vpack.c.b16 %v1132, %v1130
    %v1231 = vpack.c.b16 %v1135, %v1133
    %v1232 = vpack.c.b16 %v1136, %v1134
    %v1233 = vpack.c.b16 %v1139, %v1137
    %v1234 = vpack.c.b16 %v1140, %v1138
    %v1235 = vpack.c.b16 %v1143, %v1141
    %v1236 = vpack.c.b16 %v1144, %v1142
    %v1237 = vpack.c.b16 %v1147, %v1145
    %v1238 = vpack.c.b16 %v1148, %v1146
    %v1239 = vpack.c.b16 %v1151, %v1149
    %v1240 = vpack.c.b16 %v1152, %v1150
    %v1241 = vpack.c.b16 %v1155, %v1153
    %v1242 = vpack.c.b16 %v1156, %v1154
    %v1243 = vpack.c.b16 %v1159, %v1157
    %v1244 = vpack.c.b16 %v1160, %v1158
    %v1245 = vpack.c.b16 %v1163, %v1161
    %v1246 = vpack.c.b16 %v1164, %v1162
    %v1247 = vpack.c.b16 %v1167, %v1165
    %v1248 = vpack.c.b16 %v1168, %v1166
    %v1249 = vpack.c.b16 %v1171, %v1169
    %v1250 = vpack.c.b16 %v1172, %v1170
    %v1251 = vpack.c.b16 %v1175, %v1173
    %v1252 = vpack.c.b16 %v1176, %v1174
    %v1253 = vpack.c.b16 %v1179, %v1177
    %v1254 = vpack.c.b16 %v1180, %v1178
    %v1255 = vpack.c.b16 %v1183, %v1181
    %v1256 = vpack.c.b16 %v1184, %v1182
    %v1257 = vpack.c.b16 %v1187, %v1185
    %v1258 = vpack.c.b16 %v1188, %v1186
    %v1259 = vpack.c.b16 %v1191, %v1189
    %v1260 = vpack.c.b16 %v1192, %v1190
    %v1261 = vpack.c.b16 %v1195, %v1193
    %v1262 = vpack.c.b16 %v1196, %v1194
    %v1263 = vpack.c.b16 %v1199, %v1197
    %v1264 = vpack.c.b16 %v1200, %v1198
    %1329 = vmatprep.subr.bf16.mxu0 %v1216
    %1330 = vmatpush1.bf16.msra.mxu0 %v1215
    %1331 = vmatprep.subr.bf16.mxu0 %v1214
    %1332 = vmatpush1.bf16.msra.mxu0 %v1213
    %1333 = vmatprep.subr.bf16.mxu0 %v1212
    %1334 = vmatpush1.bf16.msra.mxu0 %v1211
    %1335 = vmatprep.subr.bf16.mxu0 %v1210
    %1336 = vmatpush1.bf16.msra.mxu0 %v1209
    %1337 = vmatprep.subr.bf16.mxu0 %v1208
    %1338 = vmatpush1.bf16.msra.mxu0 %v1207
    %1339 = vmatprep.subr.bf16.mxu0 %v1206
    %1340 = vmatpush1.bf16.msra.mxu0 %v1205
    %1341 = vmatprep.subr.bf16.mxu0 %v1204
    %1342 = vmatpush1.bf16.msra.mxu0 %v1203
    %1343 = vmatprep.subr.bf16.mxu0 %v1202
    %1344 = vmatpush1.bf16.msra.mxu0 %v1201
    %1345 = vmatprep.subr.bf16.mxu0 %v1232
    %1346 = vmatpush2.bf16.msra.mxu0 %v1231
    %1347 = vmatprep.subr.bf16.mxu0 %v1230
    %1348 = vmatpush2.bf16.msra.mxu0 %v1229
    %1349 = vmatprep.subr.bf16.mxu0 %v1228
    %1350 = vmatpush2.bf16.msra.mxu0 %v1227
    %1351 = vmatprep.subr.bf16.mxu0 %v1226
    %1352 = vmatpush2.bf16.msra.mxu0 %v1225
    %1353 = vmatprep.subr.bf16.mxu0 %v1224
    %1354 = vmatpush2.bf16.msra.mxu0 %v1223
    %1355 = vmatprep.subr.bf16.mxu0 %v1222
    %1356 = vmatpush2.bf16.msra.mxu0 %v1221
    %1357 = vmatprep.subr.bf16.mxu0 %v1220
    %1358 = vmatpush2.bf16.msra.mxu0 %v1219
    %1359 = vmatprep.subr.bf16.mxu0 %v1218
    %1360 = vmatpush2.bf16.msra.mxu0 %v1217
    %1361 = vmatprep.mubr.bf16.mxu0 %v870
    %1362 = vmatmul.mubr.bf16.gmra.mxu0 %v869
    %v1363 = vpop.f32.mrf.mxu0
    %v1364 = vadd.f32 %v1002, %v1363
    %v1365 = vpop.f32.mrf.mxu0
    %v1366 = vadd.f32 %v1006, %v1365
    %v1367 = vpop.f32.mrf.mxu0
    %v1368 = vadd.f32 %v1002, %v1367
    %v1369 = vpop.f32.mrf.mxu0
    %v1370 = vadd.f32 %v1006, %v1369
    %1371 = vmatprep.mubr.bf16.mxu0 %v874
    %1372 = vmatmul.mubr.bf16.gmra.mxu0 %v873
    %v1373 = vpop.f32.mrf.mxu0
    %v1374 = vadd.f32 %v1002, %v1373
    %v1375 = vpop.f32.mrf.mxu0
    %v1376 = vadd.f32 %v1006, %v1375
    %v1377 = vpop.f32.mrf.mxu0
    %v1378 = vadd.f32 %v1002, %v1377
    %v1379 = vpop.f32.mrf.mxu0
    %v1380 = vadd.f32 %v1006, %v1379
    %1381 = vmatprep.mubr.bf16.mxu0 %v878
    %1382 = vmatmul.mubr.bf16.gmra.mxu0 %v877
    %v1383 = vpop.f32.mrf.mxu0
    %v1384 = vadd.f32 %v1002, %v1383
    %v1385 = vpop.f32.mrf.mxu0
    %v1386 = vadd.f32 %v1006, %v1385
    %v1387 = vpop.f32.mrf.mxu0
    %v1388 = vadd.f32 %v1002, %v1387
    %v1389 = vpop.f32.mrf.mxu0
    %v1390 = vadd.f32 %v1006, %v1389
    %1391 = vmatprep.mubr.bf16.mxu0 %v882
    %1392 = vmatmul.mubr.bf16.gmra.mxu0 %v881
    %v1393 = vpop.f32.mrf.mxu0
    %v1394 = vadd.f32 %v1002, %v1393
    %v1395 = vpop.f32.mrf.mxu0
    %v1396 = vadd.f32 %v1006, %v1395
    %v1397 = vpop.f32.mrf.mxu0
    %v1398 = vadd.f32 %v1002, %v1397
    %v1399 = vpop.f32.mrf.mxu0
    %v1400 = vadd.f32 %v1006, %v1399
    %1401 = vmatprep.mubr.bf16.mxu0 %v886
    %1402 = vmatmul.mubr.bf16.gmra.mxu0 %v885
    %v1403 = vpop.f32.mrf.mxu0
    %v1404 = vadd.f32 %v1002, %v1403
    %v1405 = vpop.f32.mrf.mxu0
    %v1406 = vadd.f32 %v1006, %v1405
    %v1407 = vpop.f32.mrf.mxu0
    %v1408 = vadd.f32 %v1002, %v1407
    %v1409 = vpop.f32.mrf.mxu0
    %v1410 = vadd.f32 %v1006, %v1409
    %1411 = vmatprep.mubr.bf16.mxu0 %v890
    %1412 = vmatmul.mubr.bf16.gmra.mxu0 %v889
    %v1413 = vpop.f32.mrf.mxu0
    %v1414 = vadd.f32 %v1002, %v1413
    %v1415 = vpop.f32.mrf.mxu0
    %v1416 = vadd.f32 %v1006, %v1415
    %v1417 = vpop.f32.mrf.mxu0
    %v1418 = vadd.f32 %v1002, %v1417
    %v1419 = vpop.f32.mrf.mxu0
    %v1420 = vadd.f32 %v1006, %v1419
    %1421 = vmatprep.mubr.bf16.mxu0 %v894
    %1422 = vmatmul.mubr.bf16.gmra.mxu0 %v893
    %v1423 = vpop.f32.mrf.mxu0
    %v1424 = vadd.f32 %v1002, %v1423
    %v1425 = vpop.f32.mrf.mxu0
    %v1426 = vadd.f32 %v1006, %v1425
    %v1427 = vpop.f32.mrf.mxu0
    %v1428 = vadd.f32 %v1002, %v1427
    %v1429 = vpop.f32.mrf.mxu0
    %v1430 = vadd.f32 %v1006, %v1429
    %1431 = vmatprep.mubr.bf16.mxu0 %v898
    %1432 = vmatmul.mubr.bf16.gmra.mxu0 %v897
    %v1433 = vpop.f32.mrf.mxu0
    %v1434 = vadd.f32 %v1002, %v1433
    %v1435 = vpop.f32.mrf.mxu0
    %v1436 = vadd.f32 %v1006, %v1435
    %v1437 = vpop.f32.mrf.mxu0
    %v1438 = vadd.f32 %v1002, %v1437
    %v1439 = vpop.f32.mrf.mxu0
    %v1440 = vadd.f32 %v1006, %v1439
    %1441 = vmatprep.mubr.bf16.mxu0 %v902
    %1442 = vmatmul.mubr.bf16.gmra.mxu0 %v901
    %v1443 = vpop.f32.mrf.mxu0
    %v1444 = vadd.f32 %v1002, %v1443
    %v1445 = vpop.f32.mrf.mxu0
    %v1446 = vadd.f32 %v1006, %v1445
    %v1447 = vpop.f32.mrf.mxu0
    %v1448 = vadd.f32 %v1002, %v1447
    %v1449 = vpop.f32.mrf.mxu0
    %v1450 = vadd.f32 %v1006, %v1449
    %1451 = vmatprep.mubr.bf16.mxu0 %v906
    %1452 = vmatmul.mubr.bf16.gmra.mxu0 %v905
    %v1453 = vpop.f32.mrf.mxu0
    %v1454 = vadd.f32 %v1002, %v1453
    %v1455 = vpop.f32.mrf.mxu0
    %v1456 = vadd.f32 %v1006, %v1455
    %v1457 = vpop.f32.mrf.mxu0
    %v1458 = vadd.f32 %v1002, %v1457
    %v1459 = vpop.f32.mrf.mxu0
    %v1460 = vadd.f32 %v1006, %v1459
    %1461 = vmatprep.mubr.bf16.mxu0 %v910
    %1462 = vmatmul.mubr.bf16.gmra.mxu0 %v909
    %v1463 = vpop.f32.mrf.mxu0
    %v1464 = vadd.f32 %v1002, %v1463
    %v1465 = vpop.f32.mrf.mxu0
    %v1466 = vadd.f32 %v1006, %v1465
    %v1467 = vpop.f32.mrf.mxu0
    %v1468 = vadd.f32 %v1002, %v1467
    %v1469 = vpop.f32.mrf.mxu0
    %v1470 = vadd.f32 %v1006, %v1469
    %1471 = vmatprep.mubr.bf16.mxu0 %v914
    %1472 = vmatmul.mubr.bf16.gmra.mxu0 %v913
    %v1473 = vpop.f32.mrf.mxu0
    %v1474 = vadd.f32 %v1002, %v1473
    %v1475 = vpop.f32.mrf.mxu0
    %v1476 = vadd.f32 %v1006, %v1475
    %v1477 = vpop.f32.mrf.mxu0
    %v1478 = vadd.f32 %v1002, %v1477
    %v1479 = vpop.f32.mrf.mxu0
    %v1480 = vadd.f32 %v1006, %v1479
    %1481 = vmatprep.mubr.bf16.mxu0 %v918
    %1482 = vmatmul.mubr.bf16.gmra.mxu0 %v917
    %v1483 = vpop.f32.mrf.mxu0
    %v1484 = vadd.f32 %v1002, %v1483
    %v1485 = vpop.f32.mrf.mxu0
    %v1486 = vadd.f32 %v1006, %v1485
    %v1487 = vpop.f32.mrf.mxu0
    %v1488 = vadd.f32 %v1002, %v1487
    %v1489 = vpop.f32.mrf.mxu0
    %v1490 = vadd.f32 %v1006, %v1489
    %1491 = vmatprep.mubr.bf16.mxu0 %v922
    %1492 = vmatmul.mubr.bf16.gmra.mxu0 %v921
    %v1493 = vpop.f32.mrf.mxu0
    %v1494 = vadd.f32 %v1002, %v1493
    %v1495 = vpop.f32.mrf.mxu0
    %v1496 = vadd.f32 %v1006, %v1495
    %v1497 = vpop.f32.mrf.mxu0
    %v1498 = vadd.f32 %v1002, %v1497
    %v1499 = vpop.f32.mrf.mxu0
    %v1500 = vadd.f32 %v1006, %v1499
    %1501 = vmatprep.mubr.bf16.mxu0 %v926
    %1502 = vmatmul.mubr.bf16.gmra.mxu0 %v925
    %v1503 = vpop.f32.mrf.mxu0
    %v1504 = vadd.f32 %v1002, %v1503
    %v1505 = vpop.f32.mrf.mxu0
    %v1506 = vadd.f32 %v1006, %v1505
    %v1507 = vpop.f32.mrf.mxu0
    %v1508 = vadd.f32 %v1002, %v1507
    %v1509 = vpop.f32.mrf.mxu0
    %v1510 = vadd.f32 %v1006, %v1509
    %1511 = vmatprep.mubr.bf16.mxu0 %v930
    %1512 = vmatmul.mubr.bf16.gmra.mxu0 %v929
    %v1513 = vpop.f32.mrf.mxu0
    %v1514 = vadd.f32 %v1002, %v1513
    %v1515 = vpop.f32.mrf.mxu0
    %v1516 = vadd.f32 %v1006, %v1515
    %v1517 = vpop.f32.mrf.mxu0
    %v1518 = vadd.f32 %v1002, %v1517
    %v1519 = vpop.f32.mrf.mxu0
    %v1520 = vadd.f32 %v1006, %v1519
    %1521 = vdwg.mxu0
    %1522 = vmatprep.subr.bf16.mxu0 %v1248
    %1523 = vmatpush1.bf16.msra.mxu0 %v1247
    %1524 = vmatprep.subr.bf16.mxu0 %v1246
    %1525 = vmatpush1.bf16.msra.mxu0 %v1245
    %1526 = vmatprep.subr.bf16.mxu0 %v1244
    %1527 = vmatpush1.bf16.msra.mxu0 %v1243
    %1528 = vmatprep.subr.bf16.mxu0 %v1242
    %1529 = vmatpush1.bf16.msra.mxu0 %v1241
    %1530 = vmatprep.subr.bf16.mxu0 %v1240
    %1531 = vmatpush1.bf16.msra.mxu0 %v1239
    %1532 = vmatprep.subr.bf16.mxu0 %v1238
    %1533 = vmatpush1.bf16.msra.mxu0 %v1237
    %1534 = vmatprep.subr.bf16.mxu0 %v1236
    %1535 = vmatpush1.bf16.msra.mxu0 %v1235
    %1536 = vmatprep.subr.bf16.mxu0 %v1234
    %1537 = vmatpush1.bf16.msra.mxu0 %v1233
    %1538 = vmatprep.subr.bf16.mxu0 %v1264
    %1539 = vmatpush2.bf16.msra.mxu0 %v1263
    %1540 = vmatprep.subr.bf16.mxu0 %v1262
    %1541 = vmatpush2.bf16.msra.mxu0 %v1261
    %1542 = vmatprep.subr.bf16.mxu0 %v1260
    %1543 = vmatpush2.bf16.msra.mxu0 %v1259
    %1544 = vmatprep.subr.bf16.mxu0 %v1258
    %1545 = vmatpush2.bf16.msra.mxu0 %v1257
    %1546 = vmatprep.subr.bf16.mxu0 %v1256
    %1547 = vmatpush2.bf16.msra.mxu0 %v1255
    %1548 = vmatprep.subr.bf16.mxu0 %v1254
    %1549 = vmatpush2.bf16.msra.mxu0 %v1253
    %1550 = vmatprep.subr.bf16.mxu0 %v1252
    %1551 = vmatpush2.bf16.msra.mxu0 %v1251
    %1552 = vmatprep.subr.bf16.mxu0 %v1250
    %1553 = vmatpush2.bf16.msra.mxu0 %v1249
    %1554 = vmatprep.mubr.bf16.mxu0 %v872
    %1555 = vmatmul.mubr.bf16.gmra.mxu0 %v871
    %v1556 = vpop.f32.mrf.mxu0
    %v1557 = vadd.f32 %v1364, %v1556
    %v1558 = vpop.f32.mrf.mxu0
    %v1559 = vadd.f32 %v1366, %v1558
    %v1560 = vpop.f32.mrf.mxu0
    %v1561 = vadd.f32 %v1368, %v1560
    %v1562 = vpop.f32.mrf.mxu0
    %v1563 = vadd.f32 %v1370, %v1562
    %1564 = vmatprep.mubr.bf16.mxu0 %v876
    %1565 = vmatmul.mubr.bf16.gmra.mxu0 %v875
    %v1566 = vpop.f32.mrf.mxu0
    %v1567 = vadd.f32 %v1374, %v1566
    %v1568 = vpop.f32.mrf.mxu0
    %v1569 = vadd.f32 %v1376, %v1568
    %v1570 = vpop.f32.mrf.mxu0
    %v1571 = vadd.f32 %v1378, %v1570
    %v1572 = vpop.f32.mrf.mxu0
    %v1573 = vadd.f32 %v1380, %v1572
    %1574 = vmatprep.mubr.bf16.mxu0 %v880
    %1575 = vmatmul.mubr.bf16.gmra.mxu0 %v879
    %v1576 = vpop.f32.mrf.mxu0
    %v1577 = vadd.f32 %v1384, %v1576
    %v1578 = vpop.f32.mrf.mxu0
    %v1579 = vadd.f32 %v1386, %v1578
    %v1580 = vpop.f32.mrf.mxu0
    %v1581 = vadd.f32 %v1388, %v1580
    %v1582 = vpop.f32.mrf.mxu0
    %v1583 = vadd.f32 %v1390, %v1582
    %1584 = vmatprep.mubr.bf16.mxu0 %v884
    %1585 = vmatmul.mubr.bf16.gmra.mxu0 %v883
    %v1586 = vpop.f32.mrf.mxu0
    %v1587 = vadd.f32 %v1394, %v1586
    %v1588 = vpop.f32.mrf.mxu0
    %v1589 = vadd.f32 %v1396, %v1588
    %v1590 = vpop.f32.mrf.mxu0
    %v1591 = vadd.f32 %v1398, %v1590
    %v1592 = vpop.f32.mrf.mxu0
    %v1593 = vadd.f32 %v1400, %v1592
    %1594 = vmatprep.mubr.bf16.mxu0 %v888
    %1595 = vmatmul.mubr.bf16.gmra.mxu0 %v887
    %v1596 = vpop.f32.mrf.mxu0
    %v1597 = vadd.f32 %v1404, %v1596
    %v1598 = vpop.f32.mrf.mxu0
    %v1599 = vadd.f32 %v1406, %v1598
    %v1600 = vpop.f32.mrf.mxu0
    %v1601 = vadd.f32 %v1408, %v1600
    %v1602 = vpop.f32.mrf.mxu0
    %v1603 = vadd.f32 %v1410, %v1602
    %1604 = vmatprep.mubr.bf16.mxu0 %v892
    %1605 = vmatmul.mubr.bf16.gmra.mxu0 %v891
    %v1606 = vpop.f32.mrf.mxu0
    %v1607 = vadd.f32 %v1414, %v1606
    %v1608 = vpop.f32.mrf.mxu0
    %v1609 = vadd.f32 %v1416, %v1608
    %v1610 = vpop.f32.mrf.mxu0
    %v1611 = vadd.f32 %v1418, %v1610
    %v1612 = vpop.f32.mrf.mxu0
    %v1613 = vadd.f32 %v1420, %v1612
    %1614 = vmatprep.mubr.bf16.mxu0 %v896
    %1615 = vmatmul.mubr.bf16.gmra.mxu0 %v895
    %v1616 = vpop.f32.mrf.mxu0
    %v1617 = vadd.f32 %v1424, %v1616
    %v1618 = vpop.f32.mrf.mxu0
    %v1619 = vadd.f32 %v1426, %v1618
    %v1620 = vpop.f32.mrf.mxu0
    %v1621 = vadd.f32 %v1428, %v1620
    %v1622 = vpop.f32.mrf.mxu0
    %v1623 = vadd.f32 %v1430, %v1622
    %1624 = vmatprep.mubr.bf16.mxu0 %v900
    %1625 = vmatmul.mubr.bf16.gmra.mxu0 %v899
    %v1626 = vpop.f32.mrf.mxu0
    %v1627 = vadd.f32 %v1434, %v1626
    %v1628 = vpop.f32.mrf.mxu0
    %v1629 = vadd.f32 %v1436, %v1628
    %v1630 = vpop.f32.mrf.mxu0
    %v1631 = vadd.f32 %v1438, %v1630
    %v1632 = vpop.f32.mrf.mxu0
    %v1633 = vadd.f32 %v1440, %v1632
    %1634 = vmatprep.mubr.bf16.mxu0 %v904
    %1635 = vmatmul.mubr.bf16.gmra.mxu0 %v903
    %v1636 = vpop.f32.mrf.mxu0
    %v1637 = vadd.f32 %v1444, %v1636
    %v1638 = vpop.f32.mrf.mxu0
    %v1639 = vadd.f32 %v1446, %v1638
    %v1640 = vpop.f32.mrf.mxu0
    %v1641 = vadd.f32 %v1448, %v1640
    %v1642 = vpop.f32.mrf.mxu0
    %v1643 = vadd.f32 %v1450, %v1642
    %1644 = vmatprep.mubr.bf16.mxu0 %v908
    %1645 = vmatmul.mubr.bf16.gmra.mxu0 %v907
    %v1646 = vpop.f32.mrf.mxu0
    %v1647 = vadd.f32 %v1454, %v1646
    %v1648 = vpop.f32.mrf.mxu0
    %v1649 = vadd.f32 %v1456, %v1648
    %v1650 = vpop.f32.mrf.mxu0
    %v1651 = vadd.f32 %v1458, %v1650
    %v1652 = vpop.f32.mrf.mxu0
    %v1653 = vadd.f32 %v1460, %v1652
    %1654 = vmatprep.mubr.bf16.mxu0 %v912
    %1655 = vmatmul.mubr.bf16.gmra.mxu0 %v911
    %v1656 = vpop.f32.mrf.mxu0
    %v1657 = vadd.f32 %v1464, %v1656
    %v1658 = vpop.f32.mrf.mxu0
    %v1659 = vadd.f32 %v1466, %v1658
    %v1660 = vpop.f32.mrf.mxu0
    %v1661 = vadd.f32 %v1468, %v1660
    %v1662 = vpop.f32.mrf.mxu0
    %v1663 = vadd.f32 %v1470, %v1662
    %1664 = vmatprep.mubr.bf16.mxu0 %v916
    %1665 = vmatmul.mubr.bf16.gmra.mxu0 %v915
    %v1666 = vpop.f32.mrf.mxu0
    %v1667 = vadd.f32 %v1474, %v1666
    %v1668 = vpop.f32.mrf.mxu0
    %v1669 = vadd.f32 %v1476, %v1668
    %v1670 = vpop.f32.mrf.mxu0
    %v1671 = vadd.f32 %v1478, %v1670
    %v1672 = vpop.f32.mrf.mxu0
    %v1673 = vadd.f32 %v1480, %v1672
    %1674 = vmatprep.mubr.bf16.mxu0 %v920
    %1675 = vmatmul.mubr.bf16.gmra.mxu0 %v919
    %v1676 = vpop.f32.mrf.mxu0
    %v1677 = vadd.f32 %v1484, %v1676
    %v1678 = vpop.f32.mrf.mxu0
    %v1679 = vadd.f32 %v1486, %v1678
    %v1680 = vpop.f32.mrf.mxu0
    %v1681 = vadd.f32 %v1488, %v1680
    %v1682 = vpop.f32.mrf.mxu0
    %v1683 = vadd.f32 %v1490, %v1682
    %1684 = vmatprep.mubr.bf16.mxu0 %v924
    %1685 = vmatmul.mubr.bf16.gmra.mxu0 %v923
    %v1686 = vpop.f32.mrf.mxu0
    %v1687 = vadd.f32 %v1494, %v1686
    %v1688 = vpop.f32.mrf.mxu0
    %v1689 = vadd.f32 %v1496, %v1688
    %v1690 = vpop.f32.mrf.mxu0
    %v1691 = vadd.f32 %v1498, %v1690
    %v1692 = vpop.f32.mrf.mxu0
    %v1693 = vadd.f32 %v1500, %v1692
    %1694 = vmatprep.mubr.bf16.mxu0 %v928
    %1695 = vmatmul.mubr.bf16.gmra.mxu0 %v927
    %v1696 = vpop.f32.mrf.mxu0
    %v1697 = vadd.f32 %v1504, %v1696
    %v1698 = vpop.f32.mrf.mxu0
    %v1699 = vadd.f32 %v1506, %v1698
    %v1700 = vpop.f32.mrf.mxu0
    %v1701 = vadd.f32 %v1508, %v1700
    %v1702 = vpop.f32.mrf.mxu0
    %v1703 = vadd.f32 %v1510, %v1702
    %1704 = vmatprep.mubr.bf16.mxu0 %v932
    %1705 = vmatmul.mubr.bf16.gmra.mxu0 %v931
    %v1706 = vpop.f32.mrf.mxu0
    %v1707 = vadd.f32 %v1514, %v1706
    %v1708 = vpop.f32.mrf.mxu0
    %v1709 = vadd.f32 %v1516, %v1708
    %v1710 = vpop.f32.mrf.mxu0
    %v1711 = vadd.f32 %v1518, %v1710
    %v1712 = vpop.f32.mrf.mxu0
    %v1713 = vadd.f32 %v1520, %v1712
    %1714 = vdwg.mxu0
    %v1715 = vmax.f32 %v1557, 0.0
    %v1716 = vmax.f32 %v1559, 0.0
    %v1717 = vmax.f32 %v1561, 0.0
    %v1718 = vmax.f32 %v1563, 0.0
    %v1719 = vmax.f32 %v1567, 0.0
    %v1720 = vmax.f32 %v1569, 0.0
    %v1721 = vmax.f32 %v1571, 0.0
    %v1722 = vmax.f32 %v1573, 0.0
    %v1723 = vmax.f32 %v1577, 0.0
    %v1724 = vmax.f32 %v1579, 0.0
    %v1725 = vmax.f32 %v1581, 0.0
    %v1726 = vmax.f32 %v1583, 0.0
    %v1727 = vmax.f32 %v1587, 0.0
    %v1728 = vmax.f32 %v1589, 0.0
    %v1729 = vmax.f32 %v1591, 0.0
    %v1730 = vmax.f32 %v1593, 0.0
    %v1731 = vmax.f32 %v1597, 0.0
    %v1732 = vmax.f32 %v1599, 0.0
    %v1733 = vmax.f32 %v1601, 0.0
    %v1734 = vmax.f32 %v1603, 0.0
    %v1735 = vmax.f32 %v1607, 0.0
    %v1736 = vmax.f32 %v1609, 0.0
    %v1737 = vmax.f32 %v1611, 0.0
    %v1738 = vmax.f32 %v1613, 0.0
    %v1739 = vmax.f32 %v1617, 0.0
    %v1740 = vmax.f32 %v1619, 0.0
    %v1741 = vmax.f32 %v1621, 0.0
    %v1742 = vmax.f32 %v1623, 0.0
    %v1743 = vmax.f32 %v1627, 0.0
    %v1744 = vmax.f32 %v1629, 0.0
    %v1745 = vmax.f32 %v1631, 0.0
    %v1746 = vmax.f32 %v1633, 0.0
    %v1747 = vmax.f32 %v1637, 0.0
    %v1748 = vmax.f32 %v1639, 0.0
    %v1749 = vmax.f32 %v1641, 0.0
    %v1750 = vmax.f32 %v1643, 0.0
    %v1751 = vmax.f32 %v1647, 0.0
    %v1752 = vmax.f32 %v1649, 0.0
    %v1753 = vmax.f32 %v1651, 0.0
    %v1754 = vmax.f32 %v1653, 0.0
    %v1755 = vmax.f32 %v1657, 0.0
    %v1756 = vmax.f32 %v1659, 0.0
    %v1757 = vmax.f32 %v1661, 0.0
    %v1758 = vmax.f32 %v1663, 0.0
    %v1759 = vmax.f32 %v1667, 0.0
    %v1760 = vmax.f32 %v1669, 0.0
    %v1761 = vmax.f32 %v1671, 0.0
    %v1762 = vmax.f32 %v1673, 0.0
    %v1763 = vmax.f32 %v1677, 0.0
    %v1764 = vmax.f32 %v1679, 0.0
    %v1765 = vmax.f32 %v1681, 0.0
    %v1766 = vmax.f32 %v1683, 0.0
    %v1767 = vmax.f32 %v1687, 0.0
    %v1768 = vmax.f32 %v1689, 0.0
    %v1769 = vmax.f32 %v1691, 0.0
    %v1770 = vmax.f32 %v1693, 0.0
    %v1771 = vmax.f32 %v1697, 0.0
    %v1772 = vmax.f32 %v1699, 0.0
    %v1773 = vmax.f32 %v1701, 0.0
    %v1774 = vmax.f32 %v1703, 0.0
    %v1775 = vmax.f32 %v1707, 0.0
    %v1776 = vmax.f32 %v1709, 0.0
    %v1777 = vmax.f32 %v1711, 0.0
    %v1778 = vmax.f32 %v1713, 0.0
    %v1779 = vpack.c.bf16 %v1717, %v1715
    %v1780 = vpack.c.bf16 %v1718, %v1716
    %v1781 = vpack.c.bf16 %v1721, %v1719
    %v1782 = vpack.c.bf16 %v1722, %v1720
    %v1783 = vpack.c.bf16 %v1725, %v1723
    %v1784 = vpack.c.bf16 %v1726, %v1724
    %v1785 = vpack.c.bf16 %v1729, %v1727
    %v1786 = vpack.c.bf16 %v1730, %v1728
    %v1787 = vpack.c.bf16 %v1733, %v1731
    %v1788 = vpack.c.bf16 %v1734, %v1732
    %v1789 = vpack.c.bf16 %v1737, %v1735
    %v1790 = vpack.c.bf16 %v1738, %v1736
    %v1791 = vpack.c.bf16 %v1741, %v1739
    %v1792 = vpack.c.bf16 %v1742, %v1740
    %v1793 = vpack.c.bf16 %v1745, %v1743
    %v1794 = vpack.c.bf16 %v1746, %v1744
    %v1795 = vpack.c.bf16 %v1749, %v1747
    %v1796 = vpack.c.bf16 %v1750, %v1748
    %v1797 = vpack.c.bf16 %v1753, %v1751
    %v1798 = vpack.c.bf16 %v1754, %v1752
    %v1799 = vpack.c.bf16 %v1757, %v1755
    %v1800 = vpack.c.bf16 %v1758, %v1756
    %v1801 = vpack.c.bf16 %v1761, %v1759
    %v1802 = vpack.c.bf16 %v1762, %v1760
    %v1803 = vpack.c.bf16 %v1765, %v1763
    %v1804 = vpack.c.bf16 %v1766, %v1764
    %v1805 = vpack.c.bf16 %v1769, %v1767
    %v1806 = vpack.c.bf16 %v1770, %v1768
    %v1807 = vpack.c.bf16 %v1773, %v1771
    %v1808 = vpack.c.bf16 %v1774, %v1772
    %v1809 = vpack.c.bf16 %v1777, %v1775
    %v1810 = vpack.c.bf16 %v1778, %v1776
    %v1811 = vld [vmem:[#allocation9] sm:$0xf]
    %v1812 = vld [vmem:[#allocation9 + $0x4] sm:$0xf]
    %v1813 = vld [vmem:[#allocation9 + $0x8] sm:$0xf]
    %v1814 = vld [vmem:[#allocation9 + $0xc] sm:$0xf]
    %v1815 = vld [vmem:[#allocation9 + $0x10] sm:$0xf]
    %v1816 = vld [vmem:[#allocation9 + $0x14] sm:$0xf]
    %v1817 = vld [vmem:[#allocation9 + $0x18] sm:$0xf]
    %v1818 = vld [vmem:[#allocation9 + $0x1c] sm:$0xf]
    %v1819 = vld [vmem:[#allocation9 + $0x20] sm:$0xf]
    %v1820 = vld [vmem:[#allocation9 + $0x24] sm:$0xf]
    %v1821 = vld [vmem:[#allocation9 + $0x28] sm:$0xf]
    %v1822 = vld [vmem:[#allocation9 + $0x2c] sm:$0xf]
    %v1823 = vld [vmem:[#allocation9 + $0x30] sm:$0xf]
    %v1824 = vld [vmem:[#allocation9 + $0x34] sm:$0xf]
    %v1825 = vld [vmem:[#allocation9 + $0x38] sm:$0xf]
    %v1826 = vld [vmem:[#allocation9 + $0x3c] sm:$0xf]
    %v1827 = vld [vmem:[#allocation9 + $0x40] sm:$0xf]
    %v1828 = vld [vmem:[#allocation9 + $0x44] sm:$0xf]
    %v1829 = vld [vmem:[#allocation9 + $0x48] sm:$0xf]
    %v1830 = vld [vmem:[#allocation9 + $0x4c] sm:$0xf]
    %v1831 = vld [vmem:[#allocation9 + $0x50] sm:$0xf]
    %v1832 = vld [vmem:[#allocation9 + $0x54] sm:$0xf]
    %v1833 = vld [vmem:[#allocation9 + $0x58] sm:$0xf]
    %v1834 = vld [vmem:[#allocation9 + $0x5c] sm:$0xf]
    %v1835 = vld [vmem:[#allocation9 + $0x60] sm:$0xf]
    %v1836 = vld [vmem:[#allocation9 + $0x64] sm:$0xf]
    %v1837 = vld [vmem:[#allocation9 + $0x68] sm:$0xf]
    %v1838 = vld [vmem:[#allocation9 + $0x6c] sm:$0xf]
    %v1839 = vld [vmem:[#allocation9 + $0x70] sm:$0xf]
    %v1840 = vld [vmem:[#allocation9 + $0x74] sm:$0xf]
    %v1841 = vld [vmem:[#allocation9 + $0x78] sm:$0xf]
    %v1842 = vld [vmem:[#allocation9 + $0x7c] sm:$0xf]
    %v1843 = vld [vmem:[%s6] sm:$0x1]
    %v1845 = vlaneseq
    %v1846 = vshrl.u32 %v1845, 7
    %v1847 = vsub.s32 0, %v1846
    %v1848 = vrot.slane %v1843, %v1847
    %v1882 = vunpack.c.l.b16 %v1811
    %v1883 = vunpack.c.l.b16 %v1812
    %v1884 = vunpack.c.l.b16 %v1813
    %v1885 = vunpack.c.l.b16 %v1814
    %v1886 = vunpack.c.l.b16 %v1815
    %v1887 = vunpack.c.l.b16 %v1816
    %v1888 = vunpack.c.l.b16 %v1817
    %v1889 = vunpack.c.l.b16 %v1818
    %v1890 = vunpack.c.l.b16 %v1819
    %v1891 = vunpack.c.l.b16 %v1820
    %v1892 = vunpack.c.l.b16 %v1821
    %v1893 = vunpack.c.l.b16 %v1822
    %v1894 = vunpack.c.l.b16 %v1823
    %v1895 = vunpack.c.l.b16 %v1824
    %v1896 = vunpack.c.l.b16 %v1825
    %v1897 = vunpack.c.l.b16 %v1826
    %v1898 = vunpack.c.l.b16 %v1827
    %v1899 = vunpack.c.l.b16 %v1828
    %v1900 = vunpack.c.l.b16 %v1829
    %v1901 = vunpack.c.l.b16 %v1830
    %v1902 = vunpack.c.l.b16 %v1831
    %v1903 = vunpack.c.l.b16 %v1832
    %v1904 = vunpack.c.l.b16 %v1833
    %v1905 = vunpack.c.l.b16 %v1834
    %v1906 = vunpack.c.l.b16 %v1835
    %v1907 = vunpack.c.l.b16 %v1836
    %v1908 = vunpack.c.l.b16 %v1837
    %v1909 = vunpack.c.l.b16 %v1838
    %v1910 = vunpack.c.l.b16 %v1839
    %v1911 = vunpack.c.l.b16 %v1840
    %v1912 = vunpack.c.l.b16 %v1841
    %v1913 = vunpack.c.l.b16 %v1842
    %v1914 = vpack.c.b16 %v1883, %v1882
    %v1915 = vpack.c.b16 %v1885, %v1884
    %v1916 = vpack.c.b16 %v1887, %v1886
    %v1917 = vpack.c.b16 %v1889, %v1888
    %v1918 = vpack.c.b16 %v1891, %v1890
    %v1919 = vpack.c.b16 %v1893, %v1892
    %v1920 = vpack.c.b16 %v1895, %v1894
    %v1921 = vpack.c.b16 %v1897, %v1896
    %v1922 = vpack.c.b16 %v1899, %v1898
    %v1923 = vpack.c.b16 %v1901, %v1900
    %v1924 = vpack.c.b16 %v1903, %v1902
    %v1925 = vpack.c.b16 %v1905, %v1904
    %v1926 = vpack.c.b16 %v1907, %v1906
    %v1927 = vpack.c.b16 %v1909, %v1908
    %v1928 = vpack.c.b16 %v1911, %v1910
    %v1929 = vpack.c.b16 %v1913, %v1912
    %1946 = vmatprep.subr.bf16.mxu0 0
    %1947 = vmatpush1.bf16.msra.mxu0 %v1921
    %1948 = vmatprep.subr.bf16.mxu0 0
    %1949 = vmatpush1.bf16.msra.mxu0 %v1920
    %1950 = vmatprep.subr.bf16.mxu0 0
    %1951 = vmatpush1.bf16.msra.mxu0 %v1919
    %1952 = vmatprep.subr.bf16.mxu0 0
    %1953 = vmatpush1.bf16.msra.mxu0 %v1918
    %1954 = vmatprep.subr.bf16.mxu0 0
    %1955 = vmatpush1.bf16.msra.mxu0 %v1917
    %1956 = vmatprep.subr.bf16.mxu0 0
    %1957 = vmatpush1.bf16.msra.mxu0 %v1916
    %1958 = vmatprep.subr.bf16.mxu0 0
    %1959 = vmatpush1.bf16.msra.mxu0 %v1915
    %1960 = vmatprep.subr.bf16.mxu0 0
    %1961 = vmatpush1.bf16.msra.mxu0 %v1914
    %1962 = vmatprep.subr.bf16.mxu0 0
    %1963 = vmatpush2.bf16.msra.mxu0 %v1929
    %1964 = vmatprep.subr.bf16.mxu0 0
    %1965 = vmatpush2.bf16.msra.mxu0 %v1928
    %1966 = vmatprep.subr.bf16.mxu0 0
    %1967 = vmatpush2.bf16.msra.mxu0 %v1927
    %1968 = vmatprep.subr.bf16.mxu0 0
    %1969 = vmatpush2.bf16.msra.mxu0 %v1926
    %1970 = vmatprep.subr.bf16.mxu0 0
    %1971 = vmatpush2.bf16.msra.mxu0 %v1925
    %1972 = vmatprep.subr.bf16.mxu0 0
    %1973 = vmatpush2.bf16.msra.mxu0 %v1924
    %1974 = vmatprep.subr.bf16.mxu0 0
    %1975 = vmatpush2.bf16.msra.mxu0 %v1923
    %1976 = vmatprep.subr.bf16.mxu0 0
    %1977 = vmatpush2.bf16.msra.mxu0 %v1922
    %1978 = vmatprep.mubr.bf16.mxu0 %v1780
    %1979 = vmatmul.mubr.bf16.gmra.mxu0 %v1779
    %v1980 = vpop.f32.mrf.mxu0
    %v1981 = vadd.f32 %v1848, %v1980
    %v1982 = vpop.f32.mrf.mxu0
    %v1983 = vpop.f32.mrf.mxu0
    %v1984 = vadd.f32 %v1848, %v1983
    %v1985 = vpop.f32.mrf.mxu0
    %1986 = vmatprep.mubr.bf16.mxu0 %v1782
    %1987 = vmatmul.mubr.bf16.gmra.mxu0 %v1781
    %v1988 = vpop.f32.mrf.mxu0
    %v1989 = vadd.f32 %v1848, %v1988
    %v1990 = vpop.f32.mrf.mxu0
    %v1991 = vpop.f32.mrf.mxu0
    %v1992 = vadd.f32 %v1848, %v1991
    %v1993 = vpop.f32.mrf.mxu0
    %1994 = vmatprep.mubr.bf16.mxu0 %v1784
    %1995 = vmatmul.mubr.bf16.gmra.mxu0 %v1783
    %v1996 = vpop.f32.mrf.mxu0
    %v1997 = vadd.f32 %v1848, %v1996
    %v1998 = vpop.f32.mrf.mxu0
    %v1999 = vpop.f32.mrf.mxu0
    %v2000 = vadd.f32 %v1848, %v1999
    %v2001 = vpop.f32.mrf.mxu0
    %2002 = vmatprep.mubr.bf16.mxu0 %v1786
    %2003 = vmatmul.mubr.bf16.gmra.mxu0 %v1785
    %v2004 = vpop.f32.mrf.mxu0
    %v2005 = vadd.f32 %v1848, %v2004
    %v2006 = vpop.f32.mrf.mxu0
    %v2007 = vpop.f32.mrf.mxu0
    %v2008 = vadd.f32 %v1848, %v2007
    %v2009 = vpop.f32.mrf.mxu0
    %2010 = vmatprep.mubr.bf16.mxu0 %v1788
    %2011 = vmatmul.mubr.bf16.gmra.mxu0 %v1787
    %v2012 = vpop.f32.mrf.mxu0
    %v2013 = vadd.f32 %v1848, %v2012
    %v2014 = vpop.f32.mrf.mxu0
    %v2015 = vpop.f32.mrf.mxu0
    %v2016 = vadd.f32 %v1848, %v2015
    %v2017 = vpop.f32.mrf.mxu0
    %2018 = vmatprep.mubr.bf16.mxu0 %v1790
    %2019 = vmatmul.mubr.bf16.gmra.mxu0 %v1789
    %v2020 = vpop.f32.mrf.mxu0
    %v2021 = vadd.f32 %v1848, %v2020
    %v2022 = vpop.f32.mrf.mxu0
    %v2023 = vpop.f32.mrf.mxu0
    %v2024 = vadd.f32 %v1848, %v2023
    %v2025 = vpop.f32.mrf.mxu0
    %2026 = vmatprep.mubr.bf16.mxu0 %v1792
    %2027 = vmatmul.mubr.bf16.gmra.mxu0 %v1791
    %v2028 = vpop.f32.mrf.mxu0
    %v2029 = vadd.f32 %v1848, %v2028
    %v2030 = vpop.f32.mrf.mxu0
    %v2031 = vpop.f32.mrf.mxu0
    %v2032 = vadd.f32 %v1848, %v2031
    %v2033 = vpop.f32.mrf.mxu0
    %2034 = vmatprep.mubr.bf16.mxu0 %v1794
    %2035 = vmatmul.mubr.bf16.gmra.mxu0 %v1793
    %v2036 = vpop.f32.mrf.mxu0
    %v2037 = vadd.f32 %v1848, %v2036
    %v2038 = vpop.f32.mrf.mxu0
    %v2039 = vpop.f32.mrf.mxu0
    %v2040 = vadd.f32 %v1848, %v2039
    %v2041 = vpop.f32.mrf.mxu0
    %2042 = vmatprep.mubr.bf16.mxu0 %v1796
    %2043 = vmatmul.mubr.bf16.gmra.mxu0 %v1795
    %v2044 = vpop.f32.mrf.mxu0
    %v2045 = vadd.f32 %v1848, %v2044
    %v2046 = vpop.f32.mrf.mxu0
    %v2047 = vpop.f32.mrf.mxu0
    %v2048 = vadd.f32 %v1848, %v2047
    %v2049 = vpop.f32.mrf.mxu0
    %2050 = vmatprep.mubr.bf16.mxu0 %v1798
    %2051 = vmatmul.mubr.bf16.gmra.mxu0 %v1797
    %v2052 = vpop.f32.mrf.mxu0
    %v2053 = vadd.f32 %v1848, %v2052
    %v2054 = vpop.f32.mrf.mxu0
    %v2055 = vpop.f32.mrf.mxu0
    %v2056 = vadd.f32 %v1848, %v2055
    %v2057 = vpop.f32.mrf.mxu0
    %2058 = vmatprep.mubr.bf16.mxu0 %v1800
    %2059 = vmatmul.mubr.bf16.gmra.mxu0 %v1799
    %v2060 = vpop.f32.mrf.mxu0
    %v2061 = vadd.f32 %v1848, %v2060
    %v2062 = vpop.f32.mrf.mxu0
    %v2063 = vpop.f32.mrf.mxu0
    %v2064 = vadd.f32 %v1848, %v2063
    %v2065 = vpop.f32.mrf.mxu0
    %2066 = vmatprep.mubr.bf16.mxu0 %v1802
    %2067 = vmatmul.mubr.bf16.gmra.mxu0 %v1801
    %v2068 = vpop.f32.mrf.mxu0
    %v2069 = vadd.f32 %v1848, %v2068
    %v2070 = vpop.f32.mrf.mxu0
    %v2071 = vpop.f32.mrf.mxu0
    %v2072 = vadd.f32 %v1848, %v2071
    %v2073 = vpop.f32.mrf.mxu0
    %2074 = vmatprep.mubr.bf16.mxu0 %v1804
    %2075 = vmatmul.mubr.bf16.gmra.mxu0 %v1803
    %v2076 = vpop.f32.mrf.mxu0
    %v2077 = vadd.f32 %v1848, %v2076
    %v2078 = vpop.f32.mrf.mxu0
    %v2079 = vpop.f32.mrf.mxu0
    %v2080 = vadd.f32 %v1848, %v2079
    %v2081 = vpop.f32.mrf.mxu0
    %2082 = vmatprep.mubr.bf16.mxu0 %v1806
    %2083 = vmatmul.mubr.bf16.gmra.mxu0 %v1805
    %v2084 = vpop.f32.mrf.mxu0
    %v2085 = vadd.f32 %v1848, %v2084
    %v2086 = vpop.f32.mrf.mxu0
    %v2087 = vpop.f32.mrf.mxu0
    %v2088 = vadd.f32 %v1848, %v2087
    %v2089 = vpop.f32.mrf.mxu0
    %2090 = vmatprep.mubr.bf16.mxu0 %v1808
    %2091 = vmatmul.mubr.bf16.gmra.mxu0 %v1807
    %v2092 = vpop.f32.mrf.mxu0
    %v2093 = vadd.f32 %v1848, %v2092
    %v2094 = vpop.f32.mrf.mxu0
    %v2095 = vpop.f32.mrf.mxu0
    %v2096 = vadd.f32 %v1848, %v2095
    %v2097 = vpop.f32.mrf.mxu0
    %2098 = vmatprep.mubr.bf16.mxu0 %v1810
    %2099 = vmatmul.mubr.bf16.gmra.mxu0 %v1809
    %v2100 = vpop.f32.mrf.mxu0
    %v2101 = vadd.f32 %v1848, %v2100
    %v2102 = vpop.f32.mrf.mxu0
    %v2103 = vpop.f32.mrf.mxu0
    %v2104 = vadd.f32 %v1848, %v2103
    %v2105 = vpop.f32.mrf.mxu0
    %2106 = vdwg.mxu0
    %2107 = vst [vmem:[%s7] sm:$0xff] %v1981
    %2108 = vst [vmem:[%s7 + $0x8] sm:$0xff] %v1984
    %2109 = vst [vmem:[%s7 + $0x10] sm:$0xff] %v1989
    %2110 = vst [vmem:[%s7 + $0x18] sm:$0xff] %v1992
    %2111 = vst [vmem:[%s7 + $0x20] sm:$0xff] %v1997
    %2112 = vst [vmem:[%s7 + $0x28] sm:$0xff] %v2000
    %2113 = vst [vmem:[%s7 + $0x30] sm:$0xff] %v2005
    %2114 = vst [vmem:[%s7 + $0x38] sm:$0xff] %v2008
    %2115 = vst [vmem:[%s7 + $0x40] sm:$0xff] %v2013
    %2116 = vst [vmem:[%s7 + $0x48] sm:$0xff] %v2016
    %2117 = vst [vmem:[%s7 + $0x50] sm:$0xff] %v2021
    %2118 = vst [vmem:[%s7 + $0x58] sm:$0xff] %v2024
    %2119 = vst [vmem:[%s7 + $0x60] sm:$0xff] %v2029
    %2120 = vst [vmem:[%s7 + $0x68] sm:$0xff] %v2032
    %2121 = vst [vmem:[%s7 + $0x70] sm:$0xff] %v2037
    %2122 = vst [vmem:[%s7 + $0x78] sm:$0xff] %v2040
    %2123 = vst [vmem:[%s7 + $0x80] sm:$0xff] %v2045
    %2124 = vst [vmem:[%s7 + $0x88] sm:$0xff] %v2048
    %2125 = vst [vmem:[%s7 + $0x90] sm:$0xff] %v2053
    %2126 = vst [vmem:[%s7 + $0x98] sm:$0xff] %v2056
    %2127 = vst [vmem:[%s7 + $0xa0] sm:$0xff] %v2061
    %2128 = vst [vmem:[%s7 + $0xa8] sm:$0xff] %v2064
    %2129 = vst [vmem:[%s7 + $0xb0] sm:$0xff] %v2069
    %2130 = vst [vmem:[%s7 + $0xb8] sm:$0xff] %v2072
    %2131 = vst [vmem:[%s7 + $0xc0] sm:$0xff] %v2077
    %2132 = vst [vmem:[%s7 + $0xc8] sm:$0xff] %v2080
    %2133 = vst [vmem:[%s7 + $0xd0] sm:$0xff] %v2085
    %2134 = vst [vmem:[%s7 + $0xd8] sm:$0xff] %v2088
    %2135 = vst [vmem:[%s7 + $0xe0] sm:$0xff] %v2093
    %2136 = vst [vmem:[%s7 + $0xe8] sm:$0xff] %v2096
    %2137 = vst [vmem:[%s7 + $0xf0] sm:$0xff] %v2101
    %2138 = vst [vmem:[%s7 + $0xf8] sm:$0xff] %v2104
    // Predicated region
    $region50: #{_forward.1} parent=1 // pred_check
      _
    $region51: #{_forward.1} parent=1 // pred_check_branch
      %2140 = sbr.rel (0) target = $region53
    $region52: #{_forward.1} parent=1 // pred_region
      _
    $region53: #{_forward.1} parent=1 // pred_fallthru
      _
    // Predicated region
    $region54: #{_forward.1} parent=1 // pred_check
      _
    $region55: #{_forward.1} parent=1 // pred_check_branch
      %2142 = sbr.rel (0) target = $region57
    $region56: #{_forward.1} parent=1 // pred_region
      _
    $region57: #{_forward.1} parent=1 // pred_fallthru
      _
    %2143 = vsyncpa [#allocation3], 1
    %2144 = vsyncpa [#allocation5], 1
    %2145 = vsyncpa [#allocation8], 1

</llo_original>
